<compile_context>
chip_gen: v7x
topology: tpu7x:2x2x1
jax: 0.10.0
libtpu: 0.0.40
codegen_flags: <defaults>
</compile_context>

<pallas_src>
import functools

import jax
import jax.numpy as jnp
from jax.experimental import pallas as pl
from jax.experimental.pallas import tpu as pltpu


def _round_up(x, m):
    return (x + m - 1) // m * m


def generator_kernel(z_ref,
                     w1_ref, b1_ref,
                     w2_ref, b2_ref,
                     w3_ref, b3_ref,
                     w4_ref, b4_ref,
                     out_ref):
    # One batch tile per grid step; all four layers fused.
    # bf16 operands feed the MXU, accumulation + activation math in f32.
    x = jnp.dot(z_ref[...], w1_ref[...], preferred_element_type=jnp.float32)
    x = jnp.maximum(x + b1_ref[...], 0.0)

    x = jnp.dot(x.astype(w2_ref.dtype), w2_ref[...],
                preferred_element_type=jnp.float32)
    x = jnp.maximum(x + b2_ref[...], 0.0)

    x = jnp.dot(x.astype(w3_ref.dtype), w3_ref[...],
                preferred_element_type=jnp.float32)
    x = jnp.maximum(x + b3_ref[...], 0.0)

    x = jnp.dot(x.astype(w4_ref.dtype), w4_ref[...],
                preferred_element_type=jnp.float32)
    out_ref[...] = jnp.tanh(x + b4_ref[...])


def prepare_params(params, *, weight_dtype=jnp.bfloat16):
    """One-time host-side prep: cast weights to bf16 and pad the last layer's
    output features up to a lane-dense multiple of 128.  Biases stay f32."""
    out_dim = params["w4"].shape[1]
    out_pad = _round_up(max(out_dim, 128), 128)
    prepped = {}
    for i in range(1, 5):
        w = params[f"w{i}"]
        b = params[f"b{i}"]
        if i == 4 and out_pad != out_dim:
            w = jnp.pad(w, ((0, 0), (0, out_pad - out_dim)))
            b = jnp.pad(b, ((0, 0), (0, out_pad - out_dim)))
        prepped[f"w{i}"] = w.astype(weight_dtype)
        prepped[f"b{i}"] = b.astype(jnp.float32)
    return prepped, out_dim


@functools.partial(jax.jit, static_argnames=("out_dim", "tm"))
def generator_forward(z, prepped, *, out_dim, tm=256):
    """z: (batch, latent) f32.  prepped: output of prepare_params."""
    batch, latent = z.shape
    out_pad = prepped["w4"].shape[1]
    d1 = prepped["w1"].shape[1]
    d2 = prepped["w2"].shape[1]
    d3 = prepped["w3"].shape[1]

    # Batch tiling: pad batch to a sublane-aligned tile multiple so the
    # (TM, latent) block is legal; grid pipelines batch tiles while weights
    # stay resident (constant index_map -> DMA'd once).
    tm = min(tm, _round_up(batch, 8))
    batch_pad = _round_up(batch, tm)

    zq = z.astype(prepped["w1"].dtype)
    if batch_pad != batch:
        zq = jnp.pad(zq, ((0, batch_pad - batch), (0, 0)))

    grid = (batch_pad // tm,)

    def resident(shape):
        return pl.BlockSpec(shape, lambda i: (0, 0))

    flops = 2 * batch_pad * (latent * d1 + d1 * d2 + d2 * d3 + d3 * out_pad)
    bytes_accessed = (
        int(zq.size) * zq.dtype.itemsize
        + sum(int(v.size) * v.dtype.itemsize for v in prepped.values())
        + batch_pad * out_pad * 4)

    out = pl.pallas_call(
        generator_kernel,
        out_shape=jax.ShapeDtypeStruct((batch_pad, out_pad), jnp.float32),
        grid=grid,
        in_specs=[
            pl.BlockSpec((tm, latent), lambda i: (i, 0)),   # z: tiled over batch
            resident((latent, d1)), resident((1, d1)),
            resident((d1, d2)),     resident((1, d2)),
            resident((d2, d3)),     resident((1, d3)),
            resident((d3, out_pad)), resident((1, out_pad)),
        ],
        out_specs=pl.BlockSpec((tm, out_pad), lambda i: (i, 0)),
        compiler_params=pltpu.CompilerParams(
            dimension_semantics=("parallel",),          # megacore shard on v7x
            vmem_limit_bytes=64 * 1024 * 1024),
        cost_estimate=pl.CostEstimate(
            flops=flops,
            transcendentals=batch_pad * out_pad,        # tanh
            bytes_accessed=bytes_accessed),
    )(zq,
      prepped["w1"], prepped["b1"],
      prepped["w2"], prepped["b2"],
      prepped["w3"], prepped["b3"],
      prepped["w4"], prepped["b4"])

    return out[:batch, :out_dim]


def init_params(key, latent_dim, output_dim):
    """Deterministic synthetic parameters (shapes match the PyTorch module)."""
    dims = [(latent_dim, 256), (256, 512), (512, 1024), (1024, output_dim)]
    params = {}
    for i, (fan_in, fan_out) in enumerate(dims, start=1):
        key, kw, kb = jax.random.split(key, 3)
        scale = 1.0 / jnp.sqrt(jnp.float32(fan_in))
        params[f"w{i}"] = jax.random.uniform(
            kw, (fan_in, fan_out), jnp.float32, -scale, scale)
        params[f"b{i}"] = jax.random.uniform(
            kb, (1, fan_out), jnp.float32, -scale, scale)
    return params


def reference_forward_mixed(z, prepped, out_dim):
    """Same mixed-precision math as the kernel (bf16 weights, f32 accumulate)."""
    x = z.astype(prepped["w1"].dtype)
    x = jnp.maximum(
        jnp.dot(x, prepped["w1"], preferred_element_type=jnp.float32)
        + prepped["b1"], 0.0)
    x = jnp.maximum(
        jnp.dot(x.astype(prepped["w2"].dtype), prepped["w2"],
                preferred_element_type=jnp.float32) + prepped["b2"], 0.0)
    x = jnp.maximum(
        jnp.dot(x.astype(prepped["w3"].dtype), prepped["w3"],
                preferred_element_type=jnp.float32) + prepped["b3"], 0.0)
    x = jnp.tanh(
        jnp.dot(x.astype(prepped["w4"].dtype), prepped["w4"],
                preferred_element_type=jnp.float32) + prepped["b4"])
    return x[:, :out_dim]


def reference_forward_f32(z, p):
    x = jnp.maximum(z @ p["w1"] + p["b1"], 0.0)
    x = jnp.maximum(x @ p["w2"] + p["b2"], 0.0)
    x = jnp.maximum(x @ p["w3"] + p["b3"], 0.0)
    return jnp.tanh(x @ p["w4"] + p["b4"])


if __name__ == "__main__":
    latent_dim = 32
    output_dim = 64
    batch = 2

    key = jax.random.PRNGKey(0)
    key, kz = jax.random.split(key)
    z = jax.random.normal(kz, (batch, latent_dim), jnp.float32)
    params = init_params(key, latent_dim, output_dim)

    prepped, out_dim = prepare_params(params)

    out = generator_forward(z, prepped, out_dim=out_dim)
    out = jax.block_until_ready(out)
    assert out.shape == (batch, output_dim)
    assert out.dtype == jnp.float32

    # Bit-for-bit-equivalent mixed-precision reference (same bf16 casts).
    ref_mixed = reference_forward_mixed(z, prepped, out_dim)
    assert jnp.allclose(out, ref_mixed, atol=5e-3, rtol=5e-3), \
        "mismatch vs mixed-precision reference"

    # Loose check against the full-f32 PyTorch-equivalent math
    # (tolerance loosened because weights stream as bf16).
    ref_f32 = reference_forward_f32(z, params)
    assert jnp.allclose(out, ref_f32, atol=5e-2, rtol=5e-2), \
        "mismatch vs f32 reference"

    print("KERNEL_OK")
</pallas_src>

<mosaic_0001>
module attributes {stable_mosaic.version = 11 : i64} {
  func.func @generator_kernel(%arg0: i32, %arg1: memref<8x32xbf16, #tpu.memory_space<vmem>>, %arg2: memref<32x256xbf16, #tpu.memory_space<vmem>>, %arg3: memref<1x256xf32, #tpu.memory_space<vmem>>, %arg4: memref<256x512xbf16, #tpu.memory_space<vmem>>, %arg5: memref<1x512xf32, #tpu.memory_space<vmem>>, %arg6: memref<512x1024xbf16, #tpu.memory_space<vmem>>, %arg7: memref<1x1024xf32, #tpu.memory_space<vmem>>, %arg8: memref<1024x128xbf16, #tpu.memory_space<vmem>>, %arg9: memref<1x128xf32, #tpu.memory_space<vmem>>, %arg10: memref<8x128xf32, #tpu.memory_space<vmem>>) attributes {dimension_semantics = [#tpu.dimension_semantics<parallel>], iteration_bounds = array<i64: 1>, scalar_prefetch = 0 : i64, scratch_operands = 0 : i64, tpu.core_type = #tpu.core_type<tc>, window_params = [{transform_indices = @transform_0, window_bounds = array<i64: 8, 32>}, {pipeline_mode = #tpu.pipeline_mode<synchronous>, transform_indices = @transform_1, window_bounds = array<i64: 32, 256>}, {pipeline_mode = #tpu.pipeline_mode<synchronous>, transform_indices = @transform_2, window_bounds = array<i64: 1, 256>}, {pipeline_mode = #tpu.pipeline_mode<synchronous>, transform_indices = @transform_3, window_bounds = array<i64: 256, 512>}, {pipeline_mode = #tpu.pipeline_mode<synchronous>, transform_indices = @transform_4, window_bounds = array<i64: 1, 512>}, {pipeline_mode = #tpu.pipeline_mode<synchronous>, transform_indices = @transform_5, window_bounds = array<i64: 512, 1024>}, {pipeline_mode = #tpu.pipeline_mode<synchronous>, transform_indices = @transform_6, window_bounds = array<i64: 1, 1024>}, {pipeline_mode = #tpu.pipeline_mode<synchronous>, transform_indices = @transform_7, window_bounds = array<i64: 1024, 128>}, {pipeline_mode = #tpu.pipeline_mode<synchronous>, transform_indices = @transform_8, window_bounds = array<i64: 1, 128>}, {transform_indices = @transform_9, window_bounds = array<i64: 8, 128>}]} {
    %c0 = arith.constant 0 : index
    %c0_0 = arith.constant 0 : index
    %0 = vector.load %arg1[%c0, %c0_0] : memref<8x32xbf16, #tpu.memory_space<vmem>>, vector<8x32xbf16>
    %c0_1 = arith.constant 0 : index
    %c0_2 = arith.constant 0 : index
    %1 = vector.load %arg2[%c0_1, %c0_2] : memref<32x256xbf16, #tpu.memory_space<vmem>>, vector<32x256xbf16>
    %cst = arith.constant dense<0.000000e+00> : vector<8x256xf32>
    %2 = tpu.matmul %0, %1, %cst {dimension_numbers = #tpu.dot_dimension_numbers<[1], [0], [0], [1], [0, 0, 1, 1], [], []>} : vector<8x32xbf16>, vector<32x256xbf16>, vector<8x256xf32> -> vector<8x256xf32>
    %c0_3 = arith.constant 0 : index
    %c0_4 = arith.constant 0 : index
    %3 = vector.load %arg3[%c0_3, %c0_4] : memref<1x256xf32, #tpu.memory_space<vmem>>, vector<1x256xf32>
    %4 = vector.broadcast %3 : vector<1x256xf32> to vector<8x256xf32>
    %5 = arith.addf %2, %4 : vector<8x256xf32>
    %cst_5 = arith.constant 0.000000e+00 : f32
    %6 = vector.broadcast %cst_5 : f32 to vector<8x256xf32>
    %7 = arith.maximumf %5, %6 : vector<8x256xf32>
    %8 = arith.truncf %7 : vector<8x256xf32> to vector<8x256xbf16>
    %c0_6 = arith.constant 0 : index
    %c0_7 = arith.constant 0 : index
    %9 = vector.load %arg4[%c0_6, %c0_7] : memref<256x512xbf16, #tpu.memory_space<vmem>>, vector<256x512xbf16>
    %cst_8 = arith.constant dense<0.000000e+00> : vector<8x512xf32>
    %10 = tpu.matmul %8, %9, %cst_8 {dimension_numbers = #tpu.dot_dimension_numbers<[1], [0], [0], [1], [0, 0, 1, 1], [], []>} : vector<8x256xbf16>, vector<256x512xbf16>, vector<8x512xf32> -> vector<8x512xf32>
    %c0_9 = arith.constant 0 : index
    %c0_10 = arith.constant 0 : index
    %11 = vector.load %arg5[%c0_9, %c0_10] : memref<1x512xf32, #tpu.memory_space<vmem>>, vector<1x512xf32>
    %12 = vector.broadcast %11 : vector<1x512xf32> to vector<8x512xf32>
    %13 = arith.addf %10, %12 : vector<8x512xf32>
    %cst_11 = arith.constant 0.000000e+00 : f32
    %14 = vector.broadcast %cst_11 : f32 to vector<8x512xf32>
    %15 = arith.maximumf %13, %14 : vector<8x512xf32>
    %16 = arith.truncf %15 : vector<8x512xf32> to vector<8x512xbf16>
    %c0_12 = arith.constant 0 : index
    %c0_13 = arith.constant 0 : index
    %17 = vector.load %arg6[%c0_12, %c0_13] : memref<512x1024xbf16, #tpu.memory_space<vmem>>, vector<512x1024xbf16>
    %cst_14 = arith.constant dense<0.000000e+00> : vector<8x1024xf32>
    %18 = tpu.matmul %16, %17, %cst_14 {dimension_numbers = #tpu.dot_dimension_numbers<[1], [0], [0], [1], [0, 0, 1, 1], [], []>} : vector<8x512xbf16>, vector<512x1024xbf16>, vector<8x1024xf32> -> vector<8x1024xf32>
    %c0_15 = arith.constant 0 : index
    %c0_16 = arith.constant 0 : index
    %19 = vector.load %arg7[%c0_15, %c0_16] : memref<1x1024xf32, #tpu.memory_space<vmem>>, vector<1x1024xf32>
    %20 = vector.broadcast %19 : vector<1x1024xf32> to vector<8x1024xf32>
    %21 = arith.addf %18, %20 : vector<8x1024xf32>
    %cst_17 = arith.constant 0.000000e+00 : f32
    %22 = vector.broadcast %cst_17 : f32 to vector<8x1024xf32>
    %23 = arith.maximumf %21, %22 : vector<8x1024xf32>
    %24 = arith.truncf %23 : vector<8x1024xf32> to vector<8x1024xbf16>
    %c0_18 = arith.constant 0 : index
    %c0_19 = arith.constant 0 : index
    %25 = vector.load %arg8[%c0_18, %c0_19] : memref<1024x128xbf16, #tpu.memory_space<vmem>>, vector<1024x128xbf16>
    %cst_20 = arith.constant dense<0.000000e+00> : vector<8x128xf32>
    %26 = tpu.matmul %24, %25, %cst_20 {dimension_numbers = #tpu.dot_dimension_numbers<[1], [0], [0], [1], [0, 0, 1, 1], [], []>} : vector<8x1024xbf16>, vector<1024x128xbf16>, vector<8x128xf32> -> vector<8x128xf32>
    %c0_21 = arith.constant 0 : index
    %c0_22 = arith.constant 0 : index
    %27 = vector.load %arg9[%c0_21, %c0_22] : memref<1x128xf32, #tpu.memory_space<vmem>>, vector<1x128xf32>
    %28 = vector.broadcast %27 : vector<1x128xf32> to vector<8x128xf32>
    %29 = arith.addf %26, %28 : vector<8x128xf32>
    %30 = math.tanh %29 : vector<8x128xf32>
    %c0_23 = arith.constant 0 : index
    %c0_24 = arith.constant 0 : index
    %31 = vector.load %arg10[%c0_23, %c0_24] : memref<8x128xf32, #tpu.memory_space<vmem>>, vector<8x128xf32>
    tpu.vector_store %arg10[%c0_23, %c0_24], %30 {strides = array<i32>} : memref<8x128xf32, #tpu.memory_space<vmem>>, vector<8x128xf32>,
    return
  }
  func.func @transform_0(%arg0: i32) -> (i32, i32) {
    %c0_i32 = arith.constant 0 : i32
    %c0_i32_0 = arith.constant 0 : i32
    return %arg0, %c0_i32 : i32, i32
  }
  func.func @transform_1(%arg0: i32) -> (i32, i32) {
    %c0_i32 = arith.constant 0 : i32
    %c0_i32_0 = arith.constant 0 : i32
    %c0_i32_1 = arith.constant 0 : i32
    return %c0_i32, %c0_i32_0 : i32, i32
  }
  func.func @transform_2(%arg0: i32) -> (i32, i32) {
    %c0_i32 = arith.constant 0 : i32
    %c0_i32_0 = arith.constant 0 : i32
    %c0_i32_1 = arith.constant 0 : i32
    return %c0_i32, %c0_i32_0 : i32, i32
  }
  func.func @transform_3(%arg0: i32) -> (i32, i32) {
    %c0_i32 = arith.constant 0 : i32
    %c0_i32_0 = arith.constant 0 : i32
    %c0_i32_1 = arith.constant 0 : i32
    return %c0_i32, %c0_i32_0 : i32, i32
  }
  func.func @transform_4(%arg0: i32) -> (i32, i32) {
    %c0_i32 = arith.constant 0 : i32
    %c0_i32_0 = arith.constant 0 : i32
    %c0_i32_1 = arith.constant 0 : i32
    return %c0_i32, %c0_i32_0 : i32, i32
  }
  func.func @transform_5(%arg0: i32) -> (i32, i32) {
    %c0_i32 = arith.constant 0 : i32
    %c0_i32_0 = arith.constant 0 : i32
    %c0_i32_1 = arith.constant 0 : i32
    return %c0_i32, %c0_i32_0 : i32, i32
  }
  func.func @transform_6(%arg0: i32) -> (i32, i32) {
    %c0_i32 = arith.constant 0 : i32
    %c0_i32_0 = arith.constant 0 : i32
    %c0_i32_1 = arith.constant 0 : i32
    return %c0_i32, %c0_i32_0 : i32, i32
  }
  func.func @transform_7(%arg0: i32) -> (i32, i32) {
    %c0_i32 = arith.constant 0 : i32
    %c0_i32_0 = arith.constant 0 : i32
    %c0_i32_1 = arith.constant 0 : i32
    return %c0_i32, %c0_i32_0 : i32, i32
  }
  func.func @transform_8(%arg0: i32) -> (i32, i32) {
    %c0_i32 = arith.constant 0 : i32
    %c0_i32_0 = arith.constant 0 : i32
    %c0_i32_1 = arith.constant 0 : i32
    return %c0_i32, %c0_i32_0 : i32, i32
  }
  func.func @transform_9(%arg0: i32) -> (i32, i32) {
    %c0_i32 = arith.constant 0 : i32
    %c0_i32_0 = arith.constant 0 : i32
    return %arg0, %c0_i32 : i32, i32
  }
}

</mosaic_0001>

<llo_original>
// kernel: generator_forward.1
$region0: #{generator_forward.1}
  #allocation0 [shape = 'u32[]', space=smem, size = 0x4, offset = 0x4, fixed_abs, tag = 'smem constant byte address 0x4 - core index']
  #allocation1 [shape = 'u32[144,128]{1,0:T(1,128)}', space=vmem, size = 0x12000, scoped, tag = 'internal scratch']
  %s0 = inlined_call_operand.hbm [shape: bf16[8,32], index: 0, kind: input, shape index: {}]
  %s1 = inlined_call_operand.hbm [shape: bf16[32,256], index: 1, kind: input, shape index: {}]
  %s2 = inlined_call_operand.hbm [shape: f32[1,256], index: 2, kind: input, shape index: {}]
  %s3 = inlined_call_operand.hbm [shape: bf16[256,512], index: 3, kind: input, shape index: {}]
  %s4 = inlined_call_operand.hbm [shape: f32[1,512], index: 4, kind: input, shape index: {}]
  %s5 = inlined_call_operand.hbm [shape: bf16[512,1024], index: 5, kind: input, shape index: {}]
  %s6 = inlined_call_operand.hbm [shape: f32[1,1024], index: 6, kind: input, shape index: {}]
  %s7 = inlined_call_operand.hbm [shape: bf16[1024,128], index: 7, kind: input, shape index: {}]
  %s8 = inlined_call_operand.hbm [shape: f32[1,128], index: 8, kind: input, shape index: {}]
  %s9 = inlined_call_operand.hbm [shape: f32[8,128], index: 9, kind: output, shape index: {}]
  %s10 = sld [smem:[#allocation0]]
  $region82: #{generator_forward.1} parent=0
    _
  %s12 = ssub.s32 1, %s10
  %s13 = scalar_select 0, %s12, %s10
  $region1: #{generator_forward.1} parent=0
    #allocation2 [shape = 'u8[2048]{0}', space=vmem, size = 0x800, scoped, tag = 'input window, operand 0, single buffered']
    #allocation3 [shape = 's32[1]{0}', space=sflag, size = 0x4, scoped, tag = 'scoped memory for generator_forward.1']
    #allocation4 [shape = 's32[1]{0}', space=sflag, size = 0x4, scoped, tag = 'scoped memory for generator_forward.1']
    #allocation5 [shape = 'u8[16384]{0}', space=vmem, size = 0x4000, scoped, tag = 'input window, operand 1, single buffered']
    #allocation6 [shape = 's32[1]{0}', space=sflag, size = 0x4, scoped, tag = 'scoped memory for generator_forward.1']
    #allocation7 [shape = 'u8[1024]{0}', space=vmem, size = 0x400, scoped, tag = 'input window, operand 2, single buffered']
    #allocation8 [shape = 'u8[262144]{0}', space=vmem, size = 0x40000, scoped, tag = 'input window, operand 3, single buffered']
    #allocation9 [shape = 's32[1]{0}', space=sflag, size = 0x4, scoped, tag = 'scoped memory for generator_forward.1']
    #allocation10 [shape = 'u8[2048]{0}', space=vmem, size = 0x800, scoped, tag = 'input window, operand 4, single buffered']
    #allocation11 [shape = 'u8[1048576]{0}', space=vmem, size = 0x100000, scoped, tag = 'input window, operand 5, single buffered']
    #allocation12 [shape = 's32[1]{0}', space=sflag, size = 0x4, scoped, tag = 'scoped memory for generator_forward.1']
    #allocation13 [shape = 'u8[4096]{0}', space=vmem, size = 0x1000, scoped, tag = 'input window, operand 6, single buffered']
    #allocation14 [shape = 'u8[262144]{0}', space=vmem, size = 0x40000, scoped, tag = 'input window, operand 7, single buffered']
    #allocation15 [shape = 's32[1]{0}', space=sflag, size = 0x4, scoped, tag = 'scoped memory for generator_forward.1']
    #allocation16 [shape = 'u8[512]{0}', space=vmem, size = 0x400, scoped, tag = 'input window, operand 8, single buffered']
    #allocation17 [shape = 'u8[4096]{0}', space=vmem, size = 0x1000, scoped, tag = 'output window, operand 0, single buffered']
    %14 = vsyncpa [#allocation3], 0
    %15 = vsyncpa [#allocation6], 0
    %16 = vsyncpa [#allocation9], 0
    %17 = vsyncpa [#allocation12], 0
    %18 = vsyncpa [#allocation15], 0
    %19 = vsyncpa [#allocation4], 0
    // Predicated region
    $region2: #{generator_forward.1} parent=1 // pred_check
      _
    $region3: #{generator_forward.1} parent=1 // pred_check_branch
      %21 = sbr.rel (0) target = $region5
    $region4: #{generator_forward.1} parent=1 // pred_region
      %s23 = ssub.s32 64, 64
      %24 = vsyncadd [#allocation3], %s23
      %s26 = sshll.u32 [#allocation2], 4
      %s27 = int_to_ptr.vmem [resolvable:$true] %s26
      %29 = dma.hbm_to_vmem [thread:$0]  %s0, 64, %s27, [#allocation3]
    $region5: #{generator_forward.1} parent=1 // pred_fallthru
      _
    // Predicated region
    $region6: #{generator_forward.1} parent=1 // pred_check
      _
    $region7: #{generator_forward.1} parent=1 // pred_check_branch
      %31 = sbr.rel (0) target = $region9
    $region8: #{generator_forward.1} parent=1 // pred_region
      %s33 = ssub.s32 512, 512
      %34 = vsyncadd [#allocation6], %s33
      %s35 = sshll.u32 [#allocation5], 4
      %s36 = int_to_ptr.vmem [resolvable:$true] %s35
      %41 = dma.hbm_to_vmem [thread:$0]  %s1, 512, %s36, [#allocation6], 128, 128, 8
    $region9: #{generator_forward.1} parent=1 // pred_fallthru
      _
    // Predicated region
    $region10: #{generator_forward.1} parent=1 // pred_check
      _
    $region11: #{generator_forward.1} parent=1 // pred_check_branch
      %43 = sbr.rel (0) target = $region13
    $region12: #{generator_forward.1} parent=1 // pred_region
      %s45 = ssub.s32 32, 32
      %46 = vsyncadd [#allocation6], %s45
      %s48 = sshll.u32 [#allocation7], 4
      %s49 = int_to_ptr.vmem [resolvable:$true] %s48
      %51 = dma.hbm_to_vmem [thread:$0]  %s2, 32, %s49, [#allocation6]
    $region13: #{generator_forward.1} parent=1 // pred_fallthru
      _
    // Predicated region
    $region14: #{generator_forward.1} parent=1 // pred_check
      _
    $region15: #{generator_forward.1} parent=1 // pred_check_branch
      %53 = sbr.rel (0) target = $region17
    $region16: #{generator_forward.1} parent=1 // pred_region
      %s55 = ssub.s32 8192, 8192
      %56 = vsyncadd [#allocation9], %s55
      %s57 = sshll.u32 [#allocation8], 4
      %s58 = int_to_ptr.vmem [resolvable:$true] %s57
      %63 = dma.hbm_to_vmem [thread:$0]  %s3, 8192, %s58, [#allocation9], 256, 256, 16
    $region17: #{generator_forward.1} parent=1 // pred_fallthru
      _
    // Predicated region
    $region18: #{generator_forward.1} parent=1 // pred_check
      _
    $region19: #{generator_forward.1} parent=1 // pred_check_branch
      %65 = sbr.rel (0) target = $region21
    $region20: #{generator_forward.1} parent=1 // pred_region
      %s67 = ssub.s32 64, 64
      %68 = vsyncadd [#allocation9], %s67
      %s70 = sshll.u32 [#allocation10], 4
      %s71 = int_to_ptr.vmem [resolvable:$true] %s70
      %73 = dma.hbm_to_vmem [thread:$0]  %s4, 64, %s71, [#allocation9]
    $region21: #{generator_forward.1} parent=1 // pred_fallthru
      _
    // Predicated region
    $region22: #{generator_forward.1} parent=1 // pred_check
      _
    $region23: #{generator_forward.1} parent=1 // pred_check_branch
      %75 = sbr.rel (0) target = $region25
    $region24: #{generator_forward.1} parent=1 // pred_region
      %s77 = ssub.s32 32768, 32768
      %78 = vsyncadd [#allocation12], %s77
      %s79 = sshll.u32 [#allocation11], 4
      %s80 = int_to_ptr.vmem [resolvable:$true] %s79
      %85 = dma.hbm_to_vmem [thread:$0]  %s5, 32768, %s80, [#allocation12], 512, 512, 32
    $region25: #{generator_forward.1} parent=1 // pred_fallthru
      _
    // Predicated region
    $region26: #{generator_forward.1} parent=1 // pred_check
      _
    $region27: #{generator_forward.1} parent=1 // pred_check_branch
      %87 = sbr.rel (0) target = $region29
    $region28: #{generator_forward.1} parent=1 // pred_region
      %s89 = ssub.s32 128, 128
      %90 = vsyncadd [#allocation12], %s89
      %s92 = sshll.u32 [#allocation13], 4
      %s93 = int_to_ptr.vmem [resolvable:$true] %s92
      %95 = dma.hbm_to_vmem [thread:$0]  %s6, 128, %s93, [#allocation12]
    $region29: #{generator_forward.1} parent=1 // pred_fallthru
      _
    // Predicated region
    $region30: #{generator_forward.1} parent=1 // pred_check
      _
    $region31: #{generator_forward.1} parent=1 // pred_check_branch
      %97 = sbr.rel (0) target = $region33
    $region32: #{generator_forward.1} parent=1 // pred_region
      %s99 = ssub.s32 8192, 8192
      %100 = vsyncadd [#allocation15], %s99
      %s101 = sshll.u32 [#allocation14], 4
      %s102 = int_to_ptr.vmem [resolvable:$true] %s101
      %107 = dma.hbm_to_vmem [thread:$0]  %s7, 8192, %s102, [#allocation15], 64, 64, 4
    $region33: #{generator_forward.1} parent=1 // pred_fallthru
      _
    // Predicated region
    $region34: #{generator_forward.1} parent=1 // pred_check
      _
    $region35: #{generator_forward.1} parent=1 // pred_check_branch
      %109 = sbr.rel (0) target = $region37
    $region36: #{generator_forward.1} parent=1 // pred_region
      %s111 = ssub.s32 16, 16
      %112 = vsyncadd [#allocation15], %s111
      %s114 = sshll.u32 [#allocation16], 4
      %s115 = int_to_ptr.vmem [resolvable:$true] %s114
      %117 = dma.hbm_to_vmem [thread:$0]  %s8, 16, %s115, [#allocation15]
    $region37: #{generator_forward.1} parent=1 // pred_fallthru
      _
    // Predicated region
    $region38: #{generator_forward.1} parent=1 // pred_check
      _
    $region39: #{generator_forward.1} parent=1 // pred_check_branch
      %119 = sbr.rel (0) target = $region41
    $region40: #{generator_forward.1} parent=1 // pred_region
      %120 = dma.done [#allocation3], 64
    $region41: #{generator_forward.1} parent=1 // pred_fallthru
      _
    // Predicated region
    $region42: #{generator_forward.1} parent=1 // pred_check
      _
    $region43: #{generator_forward.1} parent=1 // pred_check_branch
      %122 = sbr.rel (0) target = $region45
    $region44: #{generator_forward.1} parent=1 // pred_region
      %123 = dma.done [#allocation6], 512
    $region45: #{generator_forward.1} parent=1 // pred_fallthru
      _
    // Predicated region
    $region46: #{generator_forward.1} parent=1 // pred_check
      _
    $region47: #{generator_forward.1} parent=1 // pred_check_branch
      %125 = sbr.rel (0) target = $region49
    $region48: #{generator_forward.1} parent=1 // pred_region
      %126 = dma.done [#allocation6], 32
    $region49: #{generator_forward.1} parent=1 // pred_fallthru
      _
    // Predicated region
    $region50: #{generator_forward.1} parent=1 // pred_check
      _
    $region51: #{generator_forward.1} parent=1 // pred_check_branch
      %128 = sbr.rel (0) target = $region53
    $region52: #{generator_forward.1} parent=1 // pred_region
      %129 = dma.done [#allocation9], 8192
    $region53: #{generator_forward.1} parent=1 // pred_fallthru
      _
    // Predicated region
    $region54: #{generator_forward.1} parent=1 // pred_check
      _
    $region55: #{generator_forward.1} parent=1 // pred_check_branch
      %131 = sbr.rel (0) target = $region57
    $region56: #{generator_forward.1} parent=1 // pred_region
      %132 = dma.done [#allocation9], 64
    $region57: #{generator_forward.1} parent=1 // pred_fallthru
      _
    // Predicated region
    $region58: #{generator_forward.1} parent=1 // pred_check
      _
    $region59: #{generator_forward.1} parent=1 // pred_check_branch
      %134 = sbr.rel (0) target = $region61
    $region60: #{generator_forward.1} parent=1 // pred_region
      %135 = dma.done [#allocation12], 32768
    $region61: #{generator_forward.1} parent=1 // pred_fallthru
      _
    // Predicated region
    $region62: #{generator_forward.1} parent=1 // pred_check
      _
    $region63: #{generator_forward.1} parent=1 // pred_check_branch
      %137 = sbr.rel (0) target = $region65
    $region64: #{generator_forward.1} parent=1 // pred_region
      %138 = dma.done [#allocation12], 128
    $region65: #{generator_forward.1} parent=1 // pred_fallthru
      _
    // Predicated region
    $region66: #{generator_forward.1} parent=1 // pred_check
      _
    $region67: #{generator_forward.1} parent=1 // pred_check_branch
      %140 = sbr.rel (0) target = $region69
    $region68: #{generator_forward.1} parent=1 // pred_region
      %141 = dma.done [#allocation15], 8192
    $region69: #{generator_forward.1} parent=1 // pred_fallthru
      _
    // Predicated region
    $region70: #{generator_forward.1} parent=1 // pred_check
      _
    $region71: #{generator_forward.1} parent=1 // pred_check_branch
      %143 = sbr.rel (0) target = $region73
    $region72: #{generator_forward.1} parent=1 // pred_region
      %144 = dma.done [#allocation15], 16
    $region73: #{generator_forward.1} parent=1 // pred_fallthru
      _
    %v146 = vld [vmem:[#allocation2] sm:$0xf]
    %v147 = vld [vmem:[#allocation5] sm:$0xff]
    %v148 = vld [vmem:[#allocation5 + $0x8] sm:$0xff]
    %v149 = vld [vmem:[#allocation5 + $0x10] sm:$0xff]
    %v150 = vld [vmem:[#allocation5 + $0x18] sm:$0xff]
    %v151 = vld [vmem:[#allocation7] sm:$0x3]
    %v153 = vlaneseq
    %v154 = vshrl.u32 %v153, 7
    %v155 = vsub.s32 0, %v154
    %v156 = vrot.slane %v151, %v155
    %v157 = vlaneseq
    %v158 = vshrl.u32 %v157, 7
    %v159 = vsub.s32 1, %v158
    %v160 = vrot.slane %v151, %v159
    %v167 = vunpack.c.l.b16 %v147
    %v168 = vunpack.c.h.b16 %v147
    %v169 = vunpack.c.l.b16 %v148
    %v170 = vunpack.c.h.b16 %v148
    %v171 = vunpack.c.l.b16 %v149
    %v172 = vunpack.c.h.b16 %v149
    %v173 = vunpack.c.l.b16 %v150
    %v174 = vunpack.c.h.b16 %v150
    %v175 = vpack.c.b16 %v169, %v167
    %v176 = vpack.c.b16 %v170, %v168
    %v177 = vpack.c.b16 %v173, %v171
    %v178 = vpack.c.b16 %v174, %v172
    %vm183 = vcmask 261120
    %v185 = vsel %vm183, %v146, 0
    %187 = vmatprep.subr.bf16.mxu0 %v176
    %188 = vmatpush1.bf16.msra.mxu0 %v175
    %189 = vmatprep.subr.bf16.mxu0 %v178
    %190 = vmatpush1.bf16.msra.mxu0 %v177
    %191 = vmatprep.subr.bf16.mxu0 0
    %192 = vmatpush1.bf16.msra.mxu0 0
    %193 = vmatprep.subr.bf16.mxu0 0
    %194 = vmatpush1.bf16.msra.mxu0 0
    %195 = vmatprep.subr.bf16.mxu0 0
    %196 = vmatpush1.bf16.msra.mxu0 0
    %197 = vmatprep.subr.bf16.mxu0 0
    %198 = vmatpush1.bf16.msra.mxu0 0
    %199 = vmatprep.subr.bf16.mxu0 0
    %200 = vmatpush1.bf16.msra.mxu0 0
    %201 = vmatprep.subr.bf16.mxu0 0
    %202 = vmatpush1.bf16.msra.mxu0 0
    %203 = vmatprep.subr.bf16.mxu0 0
    %204 = vmatpush1.bf16.msra.mxu0 0
    %205 = vmatprep.subr.bf16.mxu0 0
    %206 = vmatpush1.bf16.msra.mxu0 0
    %207 = vmatprep.subr.bf16.mxu0 0
    %208 = vmatpush1.bf16.msra.mxu0 0
    %209 = vmatprep.subr.bf16.mxu0 0
    %210 = vmatpush1.bf16.msra.mxu0 0
    %211 = vmatprep.subr.bf16.mxu0 0
    %212 = vmatpush1.bf16.msra.mxu0 0
    %213 = vmatprep.subr.bf16.mxu0 0
    %214 = vmatpush1.bf16.msra.mxu0 0
    %215 = vmatprep.subr.bf16.mxu0 0
    %216 = vmatpush1.bf16.msra.mxu0 0
    %217 = vmatprep.subr.bf16.mxu0 0
    %218 = vmatpush1.bf16.msra.mxu0 0
    %219 = vmatprep.mubr.bf16.mxu0 0
    %220 = vmatmul.mubr.bf16.gmra.mrb[0].mxu0 %v185
    %v221 = vpop.f32.mrb[0].mxu0
    %v222 = vadd.f32 %v156, %v221
    %v223 = vpop.f32.mrb[0].mxu0
    %v224 = vadd.f32 %v160, %v223
    %v225 = vpop.f32.mrb[0].mxu0
    %v226 = vpop.f32.mrb[0].mxu0
    %227 = vdwg.mxu0
    %v228 = vmax.f32 %v222, 0.0
    %v229 = vmax.f32 %v224, 0.0
    %v230 = vpack.c.bf16 %v228, %v228
    %v231 = vpack.c.bf16 %v229, %v229
    %v232 = vld [vmem:[#allocation8] sm:$0xff]
    %v233 = vld [vmem:[#allocation8 + $0x8] sm:$0xff]
    %v234 = vld [vmem:[#allocation8 + $0x10] sm:$0xff]
    %v235 = vld [vmem:[#allocation8 + $0x18] sm:$0xff]
    %v236 = vld [vmem:[#allocation8 + $0x20] sm:$0xff]
    %v237 = vld [vmem:[#allocation8 + $0x28] sm:$0xff]
    %v238 = vld [vmem:[#allocation8 + $0x30] sm:$0xff]
    %v239 = vld [vmem:[#allocation8 + $0x38] sm:$0xff]
    %v240 = vld [vmem:[#allocation8 + $0x40] sm:$0xff]
    %v241 = vld [vmem:[#allocation8 + $0x48] sm:$0xff]
    %v242 = vld [vmem:[#allocation8 + $0x50] sm:$0xff]
    %v243 = vld [vmem:[#allocation8 + $0x58] sm:$0xff]
    %v244 = vld [vmem:[#allocation8 + $0x60] sm:$0xff]
    %v245 = vld [vmem:[#allocation8 + $0x68] sm:$0xff]
    %v246 = vld [vmem:[#allocation8 + $0x70] sm:$0xff]
    %v247 = vld [vmem:[#allocation8 + $0x78] sm:$0xff]
    %v248 = vld [vmem:[#allocation8 + $0x80] sm:$0xff]
    %v249 = vld [vmem:[#allocation8 + $0x88] sm:$0xff]
    %v250 = vld [vmem:[#allocation8 + $0x90] sm:$0xff]
    %v251 = vld [vmem:[#allocation8 + $0x98] sm:$0xff]
    %v252 = vld [vmem:[#allocation8 + $0xa0] sm:$0xff]
    %v253 = vld [vmem:[#allocation8 + $0xa8] sm:$0xff]
    %v254 = vld [vmem:[#allocation8 + $0xb0] sm:$0xff]
    %v255 = vld [vmem:[#allocation8 + $0xb8] sm:$0xff]
    %v256 = vld [vmem:[#allocation8 + $0xc0] sm:$0xff]
    %v257 = vld [vmem:[#allocation8 + $0xc8] sm:$0xff]
    %v258 = vld [vmem:[#allocation8 + $0xd0] sm:$0xff]
    %v259 = vld [vmem:[#allocation8 + $0xd8] sm:$0xff]
    %v260 = vld [vmem:[#allocation8 + $0xe0] sm:$0xff]
    %v261 = vld [vmem:[#allocation8 + $0xe8] sm:$0xff]
    %v262 = vld [vmem:[#allocation8 + $0xf0] sm:$0xff]
    %v263 = vld [vmem:[#allocation8 + $0xf8] sm:$0xff]
    %v264 = vld [vmem:[#allocation8 + $0x100] sm:$0xff]
    %v265 = vld [vmem:[#allocation8 + $0x108] sm:$0xff]
    %v266 = vld [vmem:[#allocation8 + $0x110] sm:$0xff]
    %v267 = vld [vmem:[#allocation8 + $0x118] sm:$0xff]
    %v268 = vld [vmem:[#allocation8 + $0x120] sm:$0xff]
    %v269 = vld [vmem:[#allocation8 + $0x128] sm:$0xff]
    %v270 = vld [vmem:[#allocation8 + $0x130] sm:$0xff]
    %v271 = vld [vmem:[#allocation8 + $0x138] sm:$0xff]
    %v272 = vld [vmem:[#allocation8 + $0x140] sm:$0xff]
    %v273 = vld [vmem:[#allocation8 + $0x148] sm:$0xff]
    %v274 = vld [vmem:[#allocation8 + $0x150] sm:$0xff]
    %v275 = vld [vmem:[#allocation8 + $0x158] sm:$0xff]
    %v276 = vld [vmem:[#allocation8 + $0x160] sm:$0xff]
    %v277 = vld [vmem:[#allocation8 + $0x168] sm:$0xff]
    %v278 = vld [vmem:[#allocation8 + $0x170] sm:$0xff]
    %v279 = vld [vmem:[#allocation8 + $0x178] sm:$0xff]
    %v280 = vld [vmem:[#allocation8 + $0x180] sm:$0xff]
    %v281 = vld [vmem:[#allocation8 + $0x188] sm:$0xff]
    %v282 = vld [vmem:[#allocation8 + $0x190] sm:$0xff]
    %v283 = vld [vmem:[#allocation8 + $0x198] sm:$0xff]
    %v284 = vld [vmem:[#allocation8 + $0x1a0] sm:$0xff]
    %v285 = vld [vmem:[#allocation8 + $0x1a8] sm:$0xff]
    %v286 = vld [vmem:[#allocation8 + $0x1b0] sm:$0xff]
    %v287 = vld [vmem:[#allocation8 + $0x1b8] sm:$0xff]
    %v288 = vld [vmem:[#allocation8 + $0x1c0] sm:$0xff]
    %v289 = vld [vmem:[#allocation8 + $0x1c8] sm:$0xff]
    %v290 = vld [vmem:[#allocation8 + $0x1d0] sm:$0xff]
    %v291 = vld [vmem:[#allocation8 + $0x1d8] sm:$0xff]
    %v292 = vld [vmem:[#allocation8 + $0x1e0] sm:$0xff]
    %v293 = vld [vmem:[#allocation8 + $0x1e8] sm:$0xff]
    %v294 = vld [vmem:[#allocation8 + $0x1f0] sm:$0xff]
    %v295 = vld [vmem:[#allocation8 + $0x1f8] sm:$0xff]
    %v296 = vld [vmem:[#allocation10] sm:$0xf]
    %v298 = vlaneseq
    %v299 = vshrl.u32 %v298, 7
    %v300 = vsub.s32 0, %v299
    %v301 = vrot.slane %v296, %v300
    %v302 = vlaneseq
    %v303 = vshrl.u32 %v302, 7
    %v304 = vsub.s32 1, %v303
    %v305 = vrot.slane %v296, %v304
    %v306 = vlaneseq
    %v307 = vshrl.u32 %v306, 7
    %v308 = vsub.s32 2, %v307
    %v309 = vrot.slane %v296, %v308
    %v310 = vlaneseq
    %v311 = vshrl.u32 %v310, 7
    %v312 = vsub.s32 3, %v311
    %v313 = vrot.slane %v296, %v312
    %v382 = vunpack.c.l.b16 %v232
    %v383 = vunpack.c.h.b16 %v232
    %v384 = vunpack.c.l.b16 %v233
    %v385 = vunpack.c.h.b16 %v233
    %v386 = vunpack.c.l.b16 %v234
    %v387 = vunpack.c.h.b16 %v234
    %v388 = vunpack.c.l.b16 %v235
    %v389 = vunpack.c.h.b16 %v235
    %v390 = vunpack.c.l.b16 %v236
    %v391 = vunpack.c.h.b16 %v236
    %v392 = vunpack.c.l.b16 %v237
    %v393 = vunpack.c.h.b16 %v237
    %v394 = vunpack.c.l.b16 %v238
    %v395 = vunpack.c.h.b16 %v238
    %v396 = vunpack.c.l.b16 %v239
    %v397 = vunpack.c.h.b16 %v239
    %v398 = vunpack.c.l.b16 %v240
    %v399 = vunpack.c.h.b16 %v240
    %v400 = vunpack.c.l.b16 %v241
    %v401 = vunpack.c.h.b16 %v241
    %v402 = vunpack.c.l.b16 %v242
    %v403 = vunpack.c.h.b16 %v242
    %v404 = vunpack.c.l.b16 %v243
    %v405 = vunpack.c.h.b16 %v243
    %v406 = vunpack.c.l.b16 %v244
    %v407 = vunpack.c.h.b16 %v244
    %v408 = vunpack.c.l.b16 %v245
    %v409 = vunpack.c.h.b16 %v245
    %v410 = vunpack.c.l.b16 %v246
    %v411 = vunpack.c.h.b16 %v246
    %v412 = vunpack.c.l.b16 %v247
    %v413 = vunpack.c.h.b16 %v247
    %v414 = vunpack.c.l.b16 %v248
    %v415 = vunpack.c.h.b16 %v248
    %v416 = vunpack.c.l.b16 %v249
    %v417 = vunpack.c.h.b16 %v249
    %v418 = vunpack.c.l.b16 %v250
    %v419 = vunpack.c.h.b16 %v250
    %v420 = vunpack.c.l.b16 %v251
    %v421 = vunpack.c.h.b16 %v251
    %v422 = vunpack.c.l.b16 %v252
    %v423 = vunpack.c.h.b16 %v252
    %v424 = vunpack.c.l.b16 %v253
    %v425 = vunpack.c.h.b16 %v253
    %v426 = vunpack.c.l.b16 %v254
    %v427 = vunpack.c.h.b16 %v254
    %v428 = vunpack.c.l.b16 %v255
    %v429 = vunpack.c.h.b16 %v255
    %v430 = vunpack.c.l.b16 %v256
    %v431 = vunpack.c.h.b16 %v256
    %v432 = vunpack.c.l.b16 %v257
    %v433 = vunpack.c.h.b16 %v257
    %v434 = vunpack.c.l.b16 %v258
    %v435 = vunpack.c.h.b16 %v258
    %v436 = vunpack.c.l.b16 %v259
    %v437 = vunpack.c.h.b16 %v259
    %v438 = vunpack.c.l.b16 %v260
    %v439 = vunpack.c.h.b16 %v260
    %v440 = vunpack.c.l.b16 %v261
    %v441 = vunpack.c.h.b16 %v261
    %v442 = vunpack.c.l.b16 %v262
    %v443 = vunpack.c.h.b16 %v262
    %v444 = vunpack.c.l.b16 %v263
    %v445 = vunpack.c.h.b16 %v263
    %v446 = vunpack.c.l.b16 %v264
    %v447 = vunpack.c.h.b16 %v264
    %v448 = vunpack.c.l.b16 %v265
    %v449 = vunpack.c.h.b16 %v265
    %v450 = vunpack.c.l.b16 %v266
    %v451 = vunpack.c.h.b16 %v266
    %v452 = vunpack.c.l.b16 %v267
    %v453 = vunpack.c.h.b16 %v267
    %v454 = vunpack.c.l.b16 %v268
    %v455 = vunpack.c.h.b16 %v268
    %v456 = vunpack.c.l.b16 %v269
    %v457 = vunpack.c.h.b16 %v269
    %v458 = vunpack.c.l.b16 %v270
    %v459 = vunpack.c.h.b16 %v270
    %v460 = vunpack.c.l.b16 %v271
    %v461 = vunpack.c.h.b16 %v271
    %v462 = vunpack.c.l.b16 %v272
    %v463 = vunpack.c.h.b16 %v272
    %v464 = vunpack.c.l.b16 %v273
    %v465 = vunpack.c.h.b16 %v273
    %v466 = vunpack.c.l.b16 %v274
    %v467 = vunpack.c.h.b16 %v274
    %v468 = vunpack.c.l.b16 %v275
    %v469 = vunpack.c.h.b16 %v275
    %v470 = vunpack.c.l.b16 %v276
    %v471 = vunpack.c.h.b16 %v276
    %v472 = vunpack.c.l.b16 %v277
    %v473 = vunpack.c.h.b16 %v277
    %v474 = vunpack.c.l.b16 %v278
    %v475 = vunpack.c.h.b16 %v278
    %v476 = vunpack.c.l.b16 %v279
    %v477 = vunpack.c.h.b16 %v279
    %v478 = vunpack.c.l.b16 %v280
    %v479 = vunpack.c.h.b16 %v280
    %v480 = vunpack.c.l.b16 %v281
    %v481 = vunpack.c.h.b16 %v281
    %v482 = vunpack.c.l.b16 %v282
    %v483 = vunpack.c.h.b16 %v282
    %v484 = vunpack.c.l.b16 %v283
    %v485 = vunpack.c.h.b16 %v283
    %v486 = vunpack.c.l.b16 %v284
    %v487 = vunpack.c.h.b16 %v284
    %v488 = vunpack.c.l.b16 %v285
    %v489 = vunpack.c.h.b16 %v285
    %v490 = vunpack.c.l.b16 %v286
    %v491 = vunpack.c.h.b16 %v286
    %v492 = vunpack.c.l.b16 %v287
    %v493 = vunpack.c.h.b16 %v287
    %v494 = vunpack.c.l.b16 %v288
    %v495 = vunpack.c.h.b16 %v288
    %v496 = vunpack.c.l.b16 %v289
    %v497 = vunpack.c.h.b16 %v289
    %v498 = vunpack.c.l.b16 %v290
    %v499 = vunpack.c.h.b16 %v290
    %v500 = vunpack.c.l.b16 %v291
    %v501 = vunpack.c.h.b16 %v291
    %v502 = vunpack.c.l.b16 %v292
    %v503 = vunpack.c.h.b16 %v292
    %v504 = vunpack.c.l.b16 %v293
    %v505 = vunpack.c.h.b16 %v293
    %v506 = vunpack.c.l.b16 %v294
    %v507 = vunpack.c.h.b16 %v294
    %v508 = vunpack.c.l.b16 %v295
    %v509 = vunpack.c.h.b16 %v295
    %v510 = vpack.c.b16 %v386, %v382
    %v511 = vpack.c.b16 %v387, %v383
    %v512 = vpack.c.b16 %v388, %v384
    %v513 = vpack.c.b16 %v389, %v385
    %v514 = vpack.c.b16 %v394, %v390
    %v515 = vpack.c.b16 %v395, %v391
    %v516 = vpack.c.b16 %v396, %v392
    %v517 = vpack.c.b16 %v397, %v393
    %v518 = vpack.c.b16 %v402, %v398
    %v519 = vpack.c.b16 %v403, %v399
    %v520 = vpack.c.b16 %v404, %v400
    %v521 = vpack.c.b16 %v405, %v401
    %v522 = vpack.c.b16 %v410, %v406
    %v523 = vpack.c.b16 %v411, %v407
    %v524 = vpack.c.b16 %v412, %v408
    %v525 = vpack.c.b16 %v413, %v409
    %v526 = vpack.c.b16 %v418, %v414
    %v527 = vpack.c.b16 %v419, %v415
    %v528 = vpack.c.b16 %v420, %v416
    %v529 = vpack.c.b16 %v421, %v417
    %v530 = vpack.c.b16 %v426, %v422
    %v531 = vpack.c.b16 %v427, %v423
    %v532 = vpack.c.b16 %v428, %v424
    %v533 = vpack.c.b16 %v429, %v425
    %v534 = vpack.c.b16 %v434, %v430
    %v535 = vpack.c.b16 %v435, %v431
    %v536 = vpack.c.b16 %v436, %v432
    %v537 = vpack.c.b16 %v437, %v433
    %v538 = vpack.c.b16 %v442, %v438
    %v539 = vpack.c.b16 %v443, %v439
    %v540 = vpack.c.b16 %v444, %v440
    %v541 = vpack.c.b16 %v445, %v441
    %v542 = vpack.c.b16 %v450, %v446
    %v543 = vpack.c.b16 %v451, %v447
    %v544 = vpack.c.b16 %v452, %v448
    %v545 = vpack.c.b16 %v453, %v449
    %v546 = vpack.c.b16 %v458, %v454
    %v547 = vpack.c.b16 %v459, %v455
    %v548 = vpack.c.b16 %v460, %v456
    %v549 = vpack.c.b16 %v461, %v457
    %v550 = vpack.c.b16 %v466, %v462
    %v551 = vpack.c.b16 %v467, %v463
    %v552 = vpack.c.b16 %v468, %v464
    %v553 = vpack.c.b16 %v469, %v465
    %v554 = vpack.c.b16 %v474, %v470
    %v555 = vpack.c.b16 %v475, %v471
    %v556 = vpack.c.b16 %v476, %v472
    %v557 = vpack.c.b16 %v477, %v473
    %v558 = vpack.c.b16 %v482, %v478
    %v559 = vpack.c.b16 %v483, %v479
    %v560 = vpack.c.b16 %v484, %v480
    %v561 = vpack.c.b16 %v485, %v481
    %v562 = vpack.c.b16 %v490, %v486
    %v563 = vpack.c.b16 %v491, %v487
    %v564 = vpack.c.b16 %v492, %v488
    %v565 = vpack.c.b16 %v493, %v489
    %v566 = vpack.c.b16 %v498, %v494
    %v567 = vpack.c.b16 %v499, %v495
    %v568 = vpack.c.b16 %v500, %v496
    %v569 = vpack.c.b16 %v501, %v497
    %v570 = vpack.c.b16 %v506, %v502
    %v571 = vpack.c.b16 %v507, %v503
    %v572 = vpack.c.b16 %v508, %v504
    %v573 = vpack.c.b16 %v509, %v505
    %638 = vmatprep.subr.bf16.mxu0 %v511
    %639 = vmatpush1.bf16.msra.mxu0 %v510
    %640 = vmatprep.subr.bf16.mxu0 %v515
    %641 = vmatpush1.bf16.msra.mxu0 %v514
    %642 = vmatprep.subr.bf16.mxu0 %v519
    %643 = vmatpush1.bf16.msra.mxu0 %v518
    %644 = vmatprep.subr.bf16.mxu0 %v523
    %645 = vmatpush1.bf16.msra.mxu0 %v522
    %646 = vmatprep.subr.bf16.mxu0 %v527
    %647 = vmatpush1.bf16.msra.mxu0 %v526
    %648 = vmatprep.subr.bf16.mxu0 %v531
    %649 = vmatpush1.bf16.msra.mxu0 %v530
    %650 = vmatprep.subr.bf16.mxu0 %v535
    %651 = vmatpush1.bf16.msra.mxu0 %v534
    %652 = vmatprep.subr.bf16.mxu0 %v539
    %653 = vmatpush1.bf16.msra.mxu0 %v538
    %654 = vmatprep.subr.bf16.mxu0 %v543
    %655 = vmatpush1.bf16.msra.mxu0 %v542
    %656 = vmatprep.subr.bf16.mxu0 %v547
    %657 = vmatpush1.bf16.msra.mxu0 %v546
    %658 = vmatprep.subr.bf16.mxu0 %v551
    %659 = vmatpush1.bf16.msra.mxu0 %v550
    %660 = vmatprep.subr.bf16.mxu0 %v555
    %661 = vmatpush1.bf16.msra.mxu0 %v554
    %662 = vmatprep.subr.bf16.mxu0 %v559
    %663 = vmatpush1.bf16.msra.mxu0 %v558
    %664 = vmatprep.subr.bf16.mxu0 %v563
    %665 = vmatpush1.bf16.msra.mxu0 %v562
    %666 = vmatprep.subr.bf16.mxu0 %v567
    %667 = vmatpush1.bf16.msra.mxu0 %v566
    %668 = vmatprep.subr.bf16.mxu0 %v571
    %669 = vmatpush1.bf16.msra.mxu0 %v570
    %670 = vmatprep.mubr.bf16.mxu0 %v231
    %671 = vmatmul.mubr.bf16.gmra.mrb[0].mxu0 %v230
    %v672 = vpop.f32.mrb[0].mxu0
    %v673 = vadd.f32 %v301, %v672
    %v674 = vpop.f32.mrb[0].mxu0
    %v675 = vadd.f32 %v305, %v674
    %v676 = vpop.f32.mrb[0].mxu0
    %v677 = vpop.f32.mrb[0].mxu0
    %678 = vdwg.mxu0
    %679 = vmatprep.subr.bf16.mxu0 %v513
    %680 = vmatpush1.bf16.msra.mxu0 %v512
    %681 = vmatprep.subr.bf16.mxu0 %v517
    %682 = vmatpush1.bf16.msra.mxu0 %v516
    %683 = vmatprep.subr.bf16.mxu0 %v521
    %684 = vmatpush1.bf16.msra.mxu0 %v520
    %685 = vmatprep.subr.bf16.mxu0 %v525
    %686 = vmatpush1.bf16.msra.mxu0 %v524
    %687 = vmatprep.subr.bf16.mxu0 %v529
    %688 = vmatpush1.bf16.msra.mxu0 %v528
    %689 = vmatprep.subr.bf16.mxu0 %v533
    %690 = vmatpush1.bf16.msra.mxu0 %v532
    %691 = vmatprep.subr.bf16.mxu0 %v537
    %692 = vmatpush1.bf16.msra.mxu0 %v536
    %693 = vmatprep.subr.bf16.mxu0 %v541
    %694 = vmatpush1.bf16.msra.mxu0 %v540
    %695 = vmatprep.subr.bf16.mxu0 %v545
    %696 = vmatpush1.bf16.msra.mxu0 %v544
    %697 = vmatprep.subr.bf16.mxu0 %v549
    %698 = vmatpush1.bf16.msra.mxu0 %v548
    %699 = vmatprep.subr.bf16.mxu0 %v553
    %700 = vmatpush1.bf16.msra.mxu0 %v552
    %701 = vmatprep.subr.bf16.mxu0 %v557
    %702 = vmatpush1.bf16.msra.mxu0 %v556
    %703 = vmatprep.subr.bf16.mxu0 %v561
    %704 = vmatpush1.bf16.msra.mxu0 %v560
    %705 = vmatprep.subr.bf16.mxu0 %v565
    %706 = vmatpush1.bf16.msra.mxu0 %v564
    %707 = vmatprep.subr.bf16.mxu0 %v569
    %708 = vmatpush1.bf16.msra.mxu0 %v568
    %709 = vmatprep.subr.bf16.mxu0 %v573
    %710 = vmatpush1.bf16.msra.mxu0 %v572
    %711 = vmatprep.mubr.bf16.mxu0 %v231
    %712 = vmatmul.mubr.bf16.gmra.mrb[0].mxu0 %v230
    %v713 = vpop.f32.mrb[0].mxu0
    %v714 = vadd.f32 %v309, %v713
    %v715 = vpop.f32.mrb[0].mxu0
    %v716 = vadd.f32 %v313, %v715
    %v717 = vpop.f32.mrb[0].mxu0
    %v718 = vpop.f32.mrb[0].mxu0
    %719 = vdwg.mxu0
    %v720 = vmax.f32 %v673, 0.0
    %v721 = vmax.f32 %v675, 0.0
    %v722 = vmax.f32 %v714, 0.0
    %v723 = vmax.f32 %v716, 0.0
    %v724 = vpack.c.bf16 %v720, %v720
    %v725 = vpack.c.bf16 %v721, %v721
    %v726 = vpack.c.bf16 %v722, %v722
    %v727 = vpack.c.bf16 %v723, %v723
    %v728 = vld [vmem:[#allocation11] sm:$0xff]
    %v729 = vld [vmem:[#allocation11 + $0x8] sm:$0xff]
    %v730 = vld [vmem:[#allocation11 + $0x10] sm:$0xff]
    %v731 = vld [vmem:[#allocation11 + $0x18] sm:$0xff]
    %v732 = vld [vmem:[#allocation11 + $0x20] sm:$0xff]
    %v733 = vld [vmem:[#allocation11 + $0x28] sm:$0xff]
    %v734 = vld [vmem:[#allocation11 + $0x30] sm:$0xff]
    %v735 = vld [vmem:[#allocation11 + $0x38] sm:$0xff]
    %v736 = vld [vmem:[#allocation11 + $0x40] sm:$0xff]
    %v737 = vld [vmem:[#allocation11 + $0x48] sm:$0xff]
    %v738 = vld [vmem:[#allocation11 + $0x50] sm:$0xff]
    %v739 = vld [vmem:[#allocation11 + $0x58] sm:$0xff]
    %v740 = vld [vmem:[#allocation11 + $0x60] sm:$0xff]
    %v741 = vld [vmem:[#allocation11 + $0x68] sm:$0xff]
    %v742 = vld [vmem:[#allocation11 + $0x70] sm:$0xff]
    %v743 = vld [vmem:[#allocation11 + $0x78] sm:$0xff]
    %v744 = vld [vmem:[#allocation11 + $0x80] sm:$0xff]
    %v745 = vld [vmem:[#allocation11 + $0x88] sm:$0xff]
    %v746 = vld [vmem:[#allocation11 + $0x90] sm:$0xff]
    %v747 = vld [vmem:[#allocation11 + $0x98] sm:$0xff]
    %v748 = vld [vmem:[#allocation11 + $0xa0] sm:$0xff]
    %v749 = vld [vmem:[#allocation11 + $0xa8] sm:$0xff]
    %v750 = vld [vmem:[#allocation11 + $0xb0] sm:$0xff]
    %v751 = vld [vmem:[#allocation11 + $0xb8] sm:$0xff]
    %v752 = vld [vmem:[#allocation11 + $0xc0] sm:$0xff]
    %v753 = vld [vmem:[#allocation11 + $0xc8] sm:$0xff]
    %v754 = vld [vmem:[#allocation11 + $0xd0] sm:$0xff]
    %v755 = vld [vmem:[#allocation11 + $0xd8] sm:$0xff]
    %v756 = vld [vmem:[#allocation11 + $0xe0] sm:$0xff]
    %v757 = vld [vmem:[#allocation11 + $0xe8] sm:$0xff]
    %v758 = vld [vmem:[#allocation11 + $0xf0] sm:$0xff]
    %v759 = vld [vmem:[#allocation11 + $0xf8] sm:$0xff]
    %v760 = vld [vmem:[#allocation11 + $0x100] sm:$0xff]
    %v761 = vld [vmem:[#allocation11 + $0x108] sm:$0xff]
    %v762 = vld [vmem:[#allocation11 + $0x110] sm:$0xff]
    %v763 = vld [vmem:[#allocation11 + $0x118] sm:$0xff]
    %v764 = vld [vmem:[#allocation11 + $0x120] sm:$0xff]
    %v765 = vld [vmem:[#allocation11 + $0x128] sm:$0xff]
    %v766 = vld [vmem:[#allocation11 + $0x130] sm:$0xff]
    %v767 = vld [vmem:[#allocation11 + $0x138] sm:$0xff]
    %v768 = vld [vmem:[#allocation11 + $0x140] sm:$0xff]
    %v769 = vld [vmem:[#allocation11 + $0x148] sm:$0xff]
    %v770 = vld [vmem:[#allocation11 + $0x150] sm:$0xff]
    %v771 = vld [vmem:[#allocation11 + $0x158] sm:$0xff]
    %v772 = vld [vmem:[#allocation11 + $0x160] sm:$0xff]
    %v773 = vld [vmem:[#allocation11 + $0x168] sm:$0xff]
    %v774 = vld [vmem:[#allocation11 + $0x170] sm:$0xff]
    %v775 = vld [vmem:[#allocation11 + $0x178] sm:$0xff]
    %v776 = vld [vmem:[#allocation11 + $0x180] sm:$0xff]
    %v777 = vld [vmem:[#allocation11 + $0x188] sm:$0xff]
    %v778 = vld [vmem:[#allocation11 + $0x190] sm:$0xff]
    %v779 = vld [vmem:[#allocation11 + $0x198] sm:$0xff]
    %v780 = vld [vmem:[#allocation11 + $0x1a0] sm:$0xff]
    %v781 = vld [vmem:[#allocation11 + $0x1a8] sm:$0xff]
    %v782 = vld [vmem:[#allocation11 + $0x1b0] sm:$0xff]
    %v783 = vld [vmem:[#allocation11 + $0x1b8] sm:$0xff]
    %v784 = vld [vmem:[#allocation11 + $0x1c0] sm:$0xff]
    %v785 = vld [vmem:[#allocation11 + $0x1c8] sm:$0xff]
    %v786 = vld [vmem:[#allocation11 + $0x1d0] sm:$0xff]
    %v787 = vld [vmem:[#allocation11 + $0x1d8] sm:$0xff]
    %v788 = vld [vmem:[#allocation11 + $0x1e0] sm:$0xff]
    %v789 = vld [vmem:[#allocation11 + $0x1e8] sm:$0xff]
    %v790 = vld [vmem:[#allocation11 + $0x1f0] sm:$0xff]
    %v791 = vld [vmem:[#allocation11 + $0x1f8] sm:$0xff]
    %v792 = vld [vmem:[#allocation11 + $0x200] sm:$0xff]
    %v793 = vld [vmem:[#allocation11 + $0x208] sm:$0xff]
    %v794 = vld [vmem:[#allocation11 + $0x210] sm:$0xff]
    %v795 = vld [vmem:[#allocation11 + $0x218] sm:$0xff]
    %v796 = vld [vmem:[#allocation11 + $0x220] sm:$0xff]
    %v797 = vld [vmem:[#allocation11 + $0x228] sm:$0xff]
    %v798 = vld [vmem:[#allocation11 + $0x230] sm:$0xff]
    %v799 = vld [vmem:[#allocation11 + $0x238] sm:$0xff]
    %v800 = vld [vmem:[#allocation11 + $0x240] sm:$0xff]
    %v801 = vld [vmem:[#allocation11 + $0x248] sm:$0xff]
    %v802 = vld [vmem:[#allocation11 + $0x250] sm:$0xff]
    %v803 = vld [vmem:[#allocation11 + $0x258] sm:$0xff]
    %v804 = vld [vmem:[#allocation11 + $0x260] sm:$0xff]
    %v805 = vld [vmem:[#allocation11 + $0x268] sm:$0xff]
    %v806 = vld [vmem:[#allocation11 + $0x270] sm:$0xff]
    %v807 = vld [vmem:[#allocation11 + $0x278] sm:$0xff]
    %v808 = vld [vmem:[#allocation11 + $0x280] sm:$0xff]
    %v809 = vld [vmem:[#allocation11 + $0x288] sm:$0xff]
    %v810 = vld [vmem:[#allocation11 + $0x290] sm:$0xff]
    %v811 = vld [vmem:[#allocation11 + $0x298] sm:$0xff]
    %v812 = vld [vmem:[#allocation11 + $0x2a0] sm:$0xff]
    %v813 = vld [vmem:[#allocation11 + $0x2a8] sm:$0xff]
    %v814 = vld [vmem:[#allocation11 + $0x2b0] sm:$0xff]
    %v815 = vld [vmem:[#allocation11 + $0x2b8] sm:$0xff]
    %v816 = vld [vmem:[#allocation11 + $0x2c0] sm:$0xff]
    %v817 = vld [vmem:[#allocation11 + $0x2c8] sm:$0xff]
    %v818 = vld [vmem:[#allocation11 + $0x2d0] sm:$0xff]
    %v819 = vld [vmem:[#allocation11 + $0x2d8] sm:$0xff]
    %v820 = vld [vmem:[#allocation11 + $0x2e0] sm:$0xff]
    %v821 = vld [vmem:[#allocation11 + $0x2e8] sm:$0xff]
    %v822 = vld [vmem:[#allocation11 + $0x2f0] sm:$0xff]
    %v823 = vld [vmem:[#allocation11 + $0x2f8] sm:$0xff]
    %v824 = vld [vmem:[#allocation11 + $0x300] sm:$0xff]
    %v825 = vld [vmem:[#allocation11 + $0x308] sm:$0xff]
    %v826 = vld [vmem:[#allocation11 + $0x310] sm:$0xff]
    %v827 = vld [vmem:[#allocation11 + $0x318] sm:$0xff]
    %v828 = vld [vmem:[#allocation11 + $0x320] sm:$0xff]
    %v829 = vld [vmem:[#allocation11 + $0x328] sm:$0xff]
    %v830 = vld [vmem:[#allocation11 + $0x330] sm:$0xff]
    %v831 = vld [vmem:[#allocation11 + $0x338] sm:$0xff]
    %v832 = vld [vmem:[#allocation11 + $0x340] sm:$0xff]
    %v833 = vld [vmem:[#allocation11 + $0x348] sm:$0xff]
    %v834 = vld [vmem:[#allocation11 + $0x350] sm:$0xff]
    %v835 = vld [vmem:[#allocation11 + $0x358] sm:$0xff]
    %v836 = vld [vmem:[#allocation11 + $0x360] sm:$0xff]
    %v837 = vld [vmem:[#allocation11 + $0x368] sm:$0xff]
    %v838 = vld [vmem:[#allocation11 + $0x370] sm:$0xff]
    %v839 = vld [vmem:[#allocation11 + $0x378] sm:$0xff]
    %v840 = vld [vmem:[#allocation11 + $0x380] sm:$0xff]
    %v841 = vld [vmem:[#allocation11 + $0x388] sm:$0xff]
    %v842 = vld [vmem:[#allocation11 + $0x390] sm:$0xff]
    %v843 = vld [vmem:[#allocation11 + $0x398] sm:$0xff]
    %v844 = vld [vmem:[#allocation11 + $0x3a0] sm:$0xff]
    %v845 = vld [vmem:[#allocation11 + $0x3a8] sm:$0xff]
    %v846 = vld [vmem:[#allocation11 + $0x3b0] sm:$0xff]
    %v847 = vld [vmem:[#allocation11 + $0x3b8] sm:$0xff]
    %v848 = vld [vmem:[#allocation11 + $0x3c0] sm:$0xff]
    %v849 = vld [vmem:[#allocation11 + $0x3c8] sm:$0xff]
    %v850 = vld [vmem:[#allocation11 + $0x3d0] sm:$0xff]
    %v851 = vld [vmem:[#allocation11 + $0x3d8] sm:$0xff]
    %v852 = vld [vmem:[#allocation11 + $0x3e0] sm:$0xff]
    %v853 = vld [vmem:[#allocation11 + $0x3e8] sm:$0xff]
    %v854 = vld [vmem:[#allocation11 + $0x3f0] sm:$0xff]
    %v855 = vld [vmem:[#allocation11 + $0x3f8] sm:$0xff]
    %v856 = vld [vmem:[#allocation11 + $0x400] sm:$0xff]
    %v857 = vld [vmem:[#allocation11 + $0x408] sm:$0xff]
    %v858 = vld [vmem:[#allocation11 + $0x410] sm:$0xff]
    %v859 = vld [vmem:[#allocation11 + $0x418] sm:$0xff]
    %v860 = vld [vmem:[#allocation11 + $0x420] sm:$0xff]
    %v861 = vld [vmem:[#allocation11 + $0x428] sm:$0xff]
    %v862 = vld [vmem:[#allocation11 + $0x430] sm:$0xff]
    %v863 = vld [vmem:[#allocation11 + $0x438] sm:$0xff]
    %v864 = vld [vmem:[#allocation11 + $0x440] sm:$0xff]
    %v865 = vld [vmem:[#allocation11 + $0x448] sm:$0xff]
    %v866 = vld [vmem:[#allocation11 + $0x450] sm:$0xff]
    %v867 = vld [vmem:[#allocation11 + $0x458] sm:$0xff]
    %v868 = vld [vmem:[#allocation11 + $0x460] sm:$0xff]
    %v869 = vld [vmem:[#allocation11 + $0x468] sm:$0xff]
    %v870 = vld [vmem:[#allocation11 + $0x470] sm:$0xff]
    %v871 = vld [vmem:[#allocation11 + $0x478] sm:$0xff]
    %v872 = vld [vmem:[#allocation11 + $0x480] sm:$0xff]
    %v873 = vld [vmem:[#allocation11 + $0x488] sm:$0xff]
    %v874 = vld [vmem:[#allocation11 + $0x490] sm:$0xff]
    %v875 = vld [vmem:[#allocation11 + $0x498] sm:$0xff]
    %v876 = vld [vmem:[#allocation11 + $0x4a0] sm:$0xff]
    %v877 = vld [vmem:[#allocation11 + $0x4a8] sm:$0xff]
    %v878 = vld [vmem:[#allocation11 + $0x4b0] sm:$0xff]
    %v879 = vld [vmem:[#allocation11 + $0x4b8] sm:$0xff]
    %v880 = vld [vmem:[#allocation11 + $0x4c0] sm:$0xff]
    %v881 = vld [vmem:[#allocation11 + $0x4c8] sm:$0xff]
    %v882 = vld [vmem:[#allocation11 + $0x4d0] sm:$0xff]
    %v883 = vld [vmem:[#allocation11 + $0x4d8] sm:$0xff]
    %v884 = vld [vmem:[#allocation11 + $0x4e0] sm:$0xff]
    %v885 = vld [vmem:[#allocation11 + $0x4e8] sm:$0xff]
    %v886 = vld [vmem:[#allocation11 + $0x4f0] sm:$0xff]
    %v887 = vld [vmem:[#allocation11 + $0x4f8] sm:$0xff]
    %v888 = vld [vmem:[#allocation11 + $0x500] sm:$0xff]
    %v889 = vld [vmem:[#allocation11 + $0x508] sm:$0xff]
    %v890 = vld [vmem:[#allocation11 + $0x510] sm:$0xff]
    %v891 = vld [vmem:[#allocation11 + $0x518] sm:$0xff]
    %v892 = vld [vmem:[#allocation11 + $0x520] sm:$0xff]
    %v893 = vld [vmem:[#allocation11 + $0x528] sm:$0xff]
    %v894 = vld [vmem:[#allocation11 + $0x530] sm:$0xff]
    %v895 = vld [vmem:[#allocation11 + $0x538] sm:$0xff]
    %v896 = vld [vmem:[#allocation11 + $0x540] sm:$0xff]
    %v897 = vld [vmem:[#allocation11 + $0x548] sm:$0xff]
    %v898 = vld [vmem:[#allocation11 + $0x550] sm:$0xff]
    %v899 = vld [vmem:[#allocation11 + $0x558] sm:$0xff]
    %v900 = vld [vmem:[#allocation11 + $0x560] sm:$0xff]
    %v901 = vld [vmem:[#allocation11 + $0x568] sm:$0xff]
    %v902 = vld [vmem:[#allocation11 + $0x570] sm:$0xff]
    %v903 = vld [vmem:[#allocation11 + $0x578] sm:$0xff]
    %v904 = vld [vmem:[#allocation11 + $0x580] sm:$0xff]
    %v905 = vld [vmem:[#allocation11 + $0x588] sm:$0xff]
    %v906 = vld [vmem:[#allocation11 + $0x590] sm:$0xff]
    %v907 = vld [vmem:[#allocation11 + $0x598] sm:$0xff]
    %v908 = vld [vmem:[#allocation11 + $0x5a0] sm:$0xff]
    %v909 = vld [vmem:[#allocation11 + $0x5a8] sm:$0xff]
    %v910 = vld [vmem:[#allocation11 + $0x5b0] sm:$0xff]
    %v911 = vld [vmem:[#allocation11 + $0x5b8] sm:$0xff]
    %v912 = vld [vmem:[#allocation11 + $0x5c0] sm:$0xff]
    %v913 = vld [vmem:[#allocation11 + $0x5c8] sm:$0xff]
    %v914 = vld [vmem:[#allocation11 + $0x5d0] sm:$0xff]
    %v915 = vld [vmem:[#allocation11 + $0x5d8] sm:$0xff]
    %v916 = vld [vmem:[#allocation11 + $0x5e0] sm:$0xff]
    %v917 = vld [vmem:[#allocation11 + $0x5e8] sm:$0xff]
    %v918 = vld [vmem:[#allocation11 + $0x5f0] sm:$0xff]
    %v919 = vld [vmem:[#allocation11 + $0x5f8] sm:$0xff]
    %v920 = vld [vmem:[#allocation11 + $0x600] sm:$0xff]
    %v921 = vld [vmem:[#allocation11 + $0x608] sm:$0xff]
    %v922 = vld [vmem:[#allocation11 + $0x610] sm:$0xff]
    %v923 = vld [vmem:[#allocation11 + $0x618] sm:$0xff]
    %v924 = vld [vmem:[#allocation11 + $0x620] sm:$0xff]
    %v925 = vld [vmem:[#allocation11 + $0x628] sm:$0xff]
    %v926 = vld [vmem:[#allocation11 + $0x630] sm:$0xff]
    %v927 = vld [vmem:[#allocation11 + $0x638] sm:$0xff]
    %v928 = vld [vmem:[#allocation11 + $0x640] sm:$0xff]
    %v929 = vld [vmem:[#allocation11 + $0x648] sm:$0xff]
    %v930 = vld [vmem:[#allocation11 + $0x650] sm:$0xff]
    %v931 = vld [vmem:[#allocation11 + $0x658] sm:$0xff]
    %v932 = vld [vmem:[#allocation11 + $0x660] sm:$0xff]
    %v933 = vld [vmem:[#allocation11 + $0x668] sm:$0xff]
    %v934 = vld [vmem:[#allocation11 + $0x670] sm:$0xff]
    %v935 = vld [vmem:[#allocation11 + $0x678] sm:$0xff]
    %v936 = vld [vmem:[#allocation11 + $0x680] sm:$0xff]
    %v937 = vld [vmem:[#allocation11 + $0x688] sm:$0xff]
    %v938 = vld [vmem:[#allocation11 + $0x690] sm:$0xff]
    %v939 = vld [vmem:[#allocation11 + $0x698] sm:$0xff]
    %v940 = vld [vmem:[#allocation11 + $0x6a0] sm:$0xff]
    %v941 = vld [vmem:[#allocation11 + $0x6a8] sm:$0xff]
    %v942 = vld [vmem:[#allocation11 + $0x6b0] sm:$0xff]
    %v943 = vld [vmem:[#allocation11 + $0x6b8] sm:$0xff]
    %v944 = vld [vmem:[#allocation11 + $0x6c0] sm:$0xff]
    %v945 = vld [vmem:[#allocation11 + $0x6c8] sm:$0xff]
    %v946 = vld [vmem:[#allocation11 + $0x6d0] sm:$0xff]
    %v947 = vld [vmem:[#allocation11 + $0x6d8] sm:$0xff]
    %v948 = vld [vmem:[#allocation11 + $0x6e0] sm:$0xff]
    %v949 = vld [vmem:[#allocation11 + $0x6e8] sm:$0xff]
    %v950 = vld [vmem:[#allocation11 + $0x6f0] sm:$0xff]
    %v951 = vld [vmem:[#allocation11 + $0x6f8] sm:$0xff]
    %v952 = vld [vmem:[#allocation11 + $0x700] sm:$0xff]
    %v953 = vld [vmem:[#allocation11 + $0x708] sm:$0xff]
    %v954 = vld [vmem:[#allocation11 + $0x710] sm:$0xff]
    %v955 = vld [vmem:[#allocation11 + $0x718] sm:$0xff]
    %v956 = vld [vmem:[#allocation11 + $0x720] sm:$0xff]
    %v957 = vld [vmem:[#allocation11 + $0x728] sm:$0xff]
    %v958 = vld [vmem:[#allocation11 + $0x730] sm:$0xff]
    %v959 = vld [vmem:[#allocation11 + $0x738] sm:$0xff]
    %v960 = vld [vmem:[#allocation11 + $0x740] sm:$0xff]
    %v961 = vld [vmem:[#allocation11 + $0x748] sm:$0xff]
    %v962 = vld [vmem:[#allocation11 + $0x750] sm:$0xff]
    %v963 = vld [vmem:[#allocation11 + $0x758] sm:$0xff]
    %v964 = vld [vmem:[#allocation11 + $0x760] sm:$0xff]
    %v965 = vld [vmem:[#allocation11 + $0x768] sm:$0xff]
    %v966 = vld [vmem:[#allocation11 + $0x770] sm:$0xff]
    %v967 = vld [vmem:[#allocation11 + $0x778] sm:$0xff]
    %v968 = vld [vmem:[#allocation11 + $0x780] sm:$0xff]
    %v969 = vld [vmem:[#allocation11 + $0x788] sm:$0xff]
    %v970 = vld [vmem:[#allocation11 + $0x790] sm:$0xff]
    %v971 = vld [vmem:[#allocation11 + $0x798] sm:$0xff]
    %v972 = vld [vmem:[#allocation11 + $0x7a0] sm:$0xff]
    %v973 = vld [vmem:[#allocation11 + $0x7a8] sm:$0xff]
    %v974 = vld [vmem:[#allocation11 + $0x7b0] sm:$0xff]
    %v975 = vld [vmem:[#allocation11 + $0x7b8] sm:$0xff]
    %v976 = vld [vmem:[#allocation11 + $0x7c0] sm:$0xff]
    %v977 = vld [vmem:[#allocation11 + $0x7c8] sm:$0xff]
    %v978 = vld [vmem:[#allocation11 + $0x7d0] sm:$0xff]
    %v979 = vld [vmem:[#allocation11 + $0x7d8] sm:$0xff]
    %v980 = vld [vmem:[#allocation11 + $0x7e0] sm:$0xff]
    %v981 = vld [vmem:[#allocation11 + $0x7e8] sm:$0xff]
    %v982 = vld [vmem:[#allocation11 + $0x7f0] sm:$0xff]
    %v983 = vld [vmem:[#allocation11 + $0x7f8] sm:$0xff]
    %v984 = vld [vmem:[#allocation13] sm:$0xff]
    %v986 = vlaneseq
    %v987 = vshrl.u32 %v986, 7
    %v988 = vsub.s32 0, %v987
    %v989 = vrot.slane %v984, %v988
    %v990 = vlaneseq
    %v991 = vshrl.u32 %v990, 7
    %v992 = vsub.s32 1, %v991
    %v993 = vrot.slane %v984, %v992
    %v994 = vlaneseq
    %v995 = vshrl.u32 %v994, 7
    %v996 = vsub.s32 2, %v995
    %v997 = vrot.slane %v984, %v996
    %v998 = vlaneseq
    %v999 = vshrl.u32 %v998, 7
    %v1000 = vsub.s32 3, %v999
    %v1001 = vrot.slane %v984, %v1000
    %v1002 = vlaneseq
    %v1003 = vshrl.u32 %v1002, 7
    %v1004 = vsub.s32 4, %v1003
    %v1005 = vrot.slane %v984, %v1004
    %v1006 = vlaneseq
    %v1007 = vshrl.u32 %v1006, 7
    %v1008 = vsub.s32 5, %v1007
    %v1009 = vrot.slane %v984, %v1008
    %v1010 = vlaneseq
    %v1011 = vshrl.u32 %v1010, 7
    %v1012 = vsub.s32 6, %v1011
    %v1013 = vrot.slane %v984, %v1012
    %v1014 = vlaneseq
    %v1015 = vshrl.u32 %v1014, 7
    %v1016 = vsub.s32 7, %v1015
    %v1017 = vrot.slane %v984, %v1016
    %v1282 = vunpack.c.l.b16 %v728
    %v1283 = vunpack.c.h.b16 %v728
    %v1284 = vunpack.c.l.b16 %v729
    %v1285 = vunpack.c.h.b16 %v729
    %v1286 = vunpack.c.l.b16 %v730
    %v1287 = vunpack.c.h.b16 %v730
    %v1288 = vunpack.c.l.b16 %v731
    %v1289 = vunpack.c.h.b16 %v731
    %v1290 = vunpack.c.l.b16 %v732
    %v1291 = vunpack.c.h.b16 %v732
    %v1292 = vunpack.c.l.b16 %v733
    %v1293 = vunpack.c.h.b16 %v733
    %v1294 = vunpack.c.l.b16 %v734
    %v1295 = vunpack.c.h.b16 %v734
    %v1296 = vunpack.c.l.b16 %v735
    %v1297 = vunpack.c.h.b16 %v735
    %v1298 = vunpack.c.l.b16 %v736
    %v1299 = vunpack.c.h.b16 %v736
    %v1300 = vunpack.c.l.b16 %v737
    %v1301 = vunpack.c.h.b16 %v737
    %v1302 = vunpack.c.l.b16 %v738
    %v1303 = vunpack.c.h.b16 %v738
    %v1304 = vunpack.c.l.b16 %v739
    %v1305 = vunpack.c.h.b16 %v739
    %v1306 = vunpack.c.l.b16 %v740
    %v1307 = vunpack.c.h.b16 %v740
    %v1308 = vunpack.c.l.b16 %v741
    %v1309 = vunpack.c.h.b16 %v741
    %v1310 = vunpack.c.l.b16 %v742
    %v1311 = vunpack.c.h.b16 %v742
    %v1312 = vunpack.c.l.b16 %v743
    %v1313 = vunpack.c.h.b16 %v743
    %v1314 = vunpack.c.l.b16 %v744
    %v1315 = vunpack.c.h.b16 %v744
    %v1316 = vunpack.c.l.b16 %v745
    %v1317 = vunpack.c.h.b16 %v745
    %v1318 = vunpack.c.l.b16 %v746
    %v1319 = vunpack.c.h.b16 %v746
    %v1320 = vunpack.c.l.b16 %v747
    %v1321 = vunpack.c.h.b16 %v747
    %v1322 = vunpack.c.l.b16 %v748
    %v1323 = vunpack.c.h.b16 %v748
    %v1324 = vunpack.c.l.b16 %v749
    %v1325 = vunpack.c.h.b16 %v749
    %v1326 = vunpack.c.l.b16 %v750
    %v1327 = vunpack.c.h.b16 %v750
    %v1328 = vunpack.c.l.b16 %v751
    %v1329 = vunpack.c.h.b16 %v751
    %v1330 = vunpack.c.l.b16 %v752
    %v1331 = vunpack.c.h.b16 %v752
    %v1332 = vunpack.c.l.b16 %v753
    %v1333 = vunpack.c.h.b16 %v753
    %v1334 = vunpack.c.l.b16 %v754
    %v1335 = vunpack.c.h.b16 %v754
    %v1336 = vunpack.c.l.b16 %v755
    %v1337 = vunpack.c.h.b16 %v755
    %v1338 = vunpack.c.l.b16 %v756
    %v1339 = vunpack.c.h.b16 %v756
    %v1340 = vunpack.c.l.b16 %v757
    %v1341 = vunpack.c.h.b16 %v757
    %v1342 = vunpack.c.l.b16 %v758
    %v1343 = vunpack.c.h.b16 %v758
    %v1344 = vunpack.c.l.b16 %v759
    %v1345 = vunpack.c.h.b16 %v759
    %v1346 = vunpack.c.l.b16 %v760
    %v1347 = vunpack.c.h.b16 %v760
    %v1348 = vunpack.c.l.b16 %v761
    %v1349 = vunpack.c.h.b16 %v761
    %v1350 = vunpack.c.l.b16 %v762
    %v1351 = vunpack.c.h.b16 %v762
    %v1352 = vunpack.c.l.b16 %v763
    %v1353 = vunpack.c.h.b16 %v763
    %v1354 = vunpack.c.l.b16 %v764
    %v1355 = vunpack.c.h.b16 %v764
    %v1356 = vunpack.c.l.b16 %v765
    %v1357 = vunpack.c.h.b16 %v765
    %v1358 = vunpack.c.l.b16 %v766
    %v1359 = vunpack.c.h.b16 %v766
    %v1360 = vunpack.c.l.b16 %v767
    %v1361 = vunpack.c.h.b16 %v767
    %v1362 = vunpack.c.l.b16 %v768
    %v1363 = vunpack.c.h.b16 %v768
    %v1364 = vunpack.c.l.b16 %v769
    %v1365 = vunpack.c.h.b16 %v769
    %v1366 = vunpack.c.l.b16 %v770
    %v1367 = vunpack.c.h.b16 %v770
    %v1368 = vunpack.c.l.b16 %v771
    %v1369 = vunpack.c.h.b16 %v771
    %v1370 = vunpack.c.l.b16 %v772
    %v1371 = vunpack.c.h.b16 %v772
    %v1372 = vunpack.c.l.b16 %v773
    %v1373 = vunpack.c.h.b16 %v773
    %v1374 = vunpack.c.l.b16 %v774
    %v1375 = vunpack.c.h.b16 %v774
    %v1376 = vunpack.c.l.b16 %v775
    %v1377 = vunpack.c.h.b16 %v775
    %v1378 = vunpack.c.l.b16 %v776
    %v1379 = vunpack.c.h.b16 %v776
    %v1380 = vunpack.c.l.b16 %v777
    %v1381 = vunpack.c.h.b16 %v777
    %v1382 = vunpack.c.l.b16 %v778
    %v1383 = vunpack.c.h.b16 %v778
    %v1384 = vunpack.c.l.b16 %v779
    %v1385 = vunpack.c.h.b16 %v779
    %v1386 = vunpack.c.l.b16 %v780
    %v1387 = vunpack.c.h.b16 %v780
    %v1388 = vunpack.c.l.b16 %v781
    %v1389 = vunpack.c.h.b16 %v781
    %v1390 = vunpack.c.l.b16 %v782
    %v1391 = vunpack.c.h.b16 %v782
    %v1392 = vunpack.c.l.b16 %v783
    %v1393 = vunpack.c.h.b16 %v783
    %v1394 = vunpack.c.l.b16 %v784
    %v1395 = vunpack.c.h.b16 %v784
    %v1396 = vunpack.c.l.b16 %v785
    %v1397 = vunpack.c.h.b16 %v785
    %v1398 = vunpack.c.l.b16 %v786
    %v1399 = vunpack.c.h.b16 %v786
    %v1400 = vunpack.c.l.b16 %v787
    %v1401 = vunpack.c.h.b16 %v787
    %v1402 = vunpack.c.l.b16 %v788
    %v1403 = vunpack.c.h.b16 %v788
    %v1404 = vunpack.c.l.b16 %v789
    %v1405 = vunpack.c.h.b16 %v789
    %v1406 = vunpack.c.l.b16 %v790
    %v1407 = vunpack.c.h.b16 %v790
    %v1408 = vunpack.c.l.b16 %v791
    %v1409 = vunpack.c.h.b16 %v791
    %v1410 = vunpack.c.l.b16 %v792
    %v1411 = vunpack.c.h.b16 %v792
    %v1412 = vunpack.c.l.b16 %v793
    %v1413 = vunpack.c.h.b16 %v793
    %v1414 = vunpack.c.l.b16 %v794
    %v1415 = vunpack.c.h.b16 %v794
    %v1416 = vunpack.c.l.b16 %v795
    %v1417 = vunpack.c.h.b16 %v795
    %v1418 = vunpack.c.l.b16 %v796
    %v1419 = vunpack.c.h.b16 %v796
    %v1420 = vunpack.c.l.b16 %v797
    %v1421 = vunpack.c.h.b16 %v797
    %v1422 = vunpack.c.l.b16 %v798
    %v1423 = vunpack.c.h.b16 %v798
    %v1424 = vunpack.c.l.b16 %v799
    %v1425 = vunpack.c.h.b16 %v799
    %v1426 = vunpack.c.l.b16 %v800
    %v1427 = vunpack.c.h.b16 %v800
    %v1428 = vunpack.c.l.b16 %v801
    %v1429 = vunpack.c.h.b16 %v801
    %v1430 = vunpack.c.l.b16 %v802
    %v1431 = vunpack.c.h.b16 %v802
    %v1432 = vunpack.c.l.b16 %v803
    %v1433 = vunpack.c.h.b16 %v803
    %v1434 = vunpack.c.l.b16 %v804
    %v1435 = vunpack.c.h.b16 %v804
    %v1436 = vunpack.c.l.b16 %v805
    %v1437 = vunpack.c.h.b16 %v805
    %v1438 = vunpack.c.l.b16 %v806
    %v1439 = vunpack.c.h.b16 %v806
    %v1440 = vunpack.c.l.b16 %v807
    %v1441 = vunpack.c.h.b16 %v807
    %v1442 = vunpack.c.l.b16 %v808
    %v1443 = vunpack.c.h.b16 %v808
    %v1444 = vunpack.c.l.b16 %v809
    %v1445 = vunpack.c.h.b16 %v809
    %v1446 = vunpack.c.l.b16 %v810
    %v1447 = vunpack.c.h.b16 %v810
    %v1448 = vunpack.c.l.b16 %v811
    %v1449 = vunpack.c.h.b16 %v811
    %v1450 = vunpack.c.l.b16 %v812
    %v1451 = vunpack.c.h.b16 %v812
    %v1452 = vunpack.c.l.b16 %v813
    %v1453 = vunpack.c.h.b16 %v813
    %v1454 = vunpack.c.l.b16 %v814
    %v1455 = vunpack.c.h.b16 %v814
    %v1456 = vunpack.c.l.b16 %v815
    %v1457 = vunpack.c.h.b16 %v815
    %v1458 = vunpack.c.l.b16 %v816
    %v1459 = vunpack.c.h.b16 %v816
    %v1460 = vunpack.c.l.b16 %v817
    %v1461 = vunpack.c.h.b16 %v817
    %v1462 = vunpack.c.l.b16 %v818
    %v1463 = vunpack.c.h.b16 %v818
    %v1464 = vunpack.c.l.b16 %v819
    %v1465 = vunpack.c.h.b16 %v819
    %v1466 = vunpack.c.l.b16 %v820
    %v1467 = vunpack.c.h.b16 %v820
    %v1468 = vunpack.c.l.b16 %v821
    %v1469 = vunpack.c.h.b16 %v821
    %v1470 = vunpack.c.l.b16 %v822
    %v1471 = vunpack.c.h.b16 %v822
    %v1472 = vunpack.c.l.b16 %v823
    %v1473 = vunpack.c.h.b16 %v823
    %v1474 = vunpack.c.l.b16 %v824
    %v1475 = vunpack.c.h.b16 %v824
    %v1476 = vunpack.c.l.b16 %v825
    %v1477 = vunpack.c.h.b16 %v825
    %v1478 = vunpack.c.l.b16 %v826
    %v1479 = vunpack.c.h.b16 %v826
    %v1480 = vunpack.c.l.b16 %v827
    %v1481 = vunpack.c.h.b16 %v827
    %v1482 = vunpack.c.l.b16 %v828
    %v1483 = vunpack.c.h.b16 %v828
    %v1484 = vunpack.c.l.b16 %v829
    %v1485 = vunpack.c.h.b16 %v829
    %v1486 = vunpack.c.l.b16 %v830
    %v1487 = vunpack.c.h.b16 %v830
    %v1488 = vunpack.c.l.b16 %v831
    %v1489 = vunpack.c.h.b16 %v831
    %v1490 = vunpack.c.l.b16 %v832
    %v1491 = vunpack.c.h.b16 %v832
    %v1492 = vunpack.c.l.b16 %v833
    %v1493 = vunpack.c.h.b16 %v833
    %v1494 = vunpack.c.l.b16 %v834
    %v1495 = vunpack.c.h.b16 %v834
    %v1496 = vunpack.c.l.b16 %v835
    %v1497 = vunpack.c.h.b16 %v835
    %v1498 = vunpack.c.l.b16 %v836
    %v1499 = vunpack.c.h.b16 %v836
    %v1500 = vunpack.c.l.b16 %v837
    %v1501 = vunpack.c.h.b16 %v837
    %v1502 = vunpack.c.l.b16 %v838
    %v1503 = vunpack.c.h.b16 %v838
    %v1504 = vunpack.c.l.b16 %v839
    %v1505 = vunpack.c.h.b16 %v839
    %v1506 = vunpack.c.l.b16 %v840
    %v1507 = vunpack.c.h.b16 %v840
    %v1508 = vunpack.c.l.b16 %v841
    %v1509 = vunpack.c.h.b16 %v841
    %v1510 = vunpack.c.l.b16 %v842
    %v1511 = vunpack.c.h.b16 %v842
    %v1512 = vunpack.c.l.b16 %v843
    %v1513 = vunpack.c.h.b16 %v843
    %v1514 = vunpack.c.l.b16 %v844
    %v1515 = vunpack.c.h.b16 %v844
    %v1516 = vunpack.c.l.b16 %v845
    %v1517 = vunpack.c.h.b16 %v845
    %v1518 = vunpack.c.l.b16 %v846
    %v1519 = vunpack.c.h.b16 %v846
    %v1520 = vunpack.c.l.b16 %v847
    %v1521 = vunpack.c.h.b16 %v847
    %v1522 = vunpack.c.l.b16 %v848
    %v1523 = vunpack.c.h.b16 %v848
    %v1524 = vunpack.c.l.b16 %v849
    %v1525 = vunpack.c.h.b16 %v849
    %v1526 = vunpack.c.l.b16 %v850
    %v1527 = vunpack.c.h.b16 %v850
    %v1528 = vunpack.c.l.b16 %v851
    %v1529 = vunpack.c.h.b16 %v851
    %v1530 = vunpack.c.l.b16 %v852
    %v1531 = vunpack.c.h.b16 %v852
    %v1532 = vunpack.c.l.b16 %v853
    %v1533 = vunpack.c.h.b16 %v853
    %v1534 = vunpack.c.l.b16 %v854
    %v1535 = vunpack.c.h.b16 %v854
    %v1536 = vunpack.c.l.b16 %v855
    %v1537 = vunpack.c.h.b16 %v855
    %v1538 = vunpack.c.l.b16 %v856
    %v1539 = vunpack.c.h.b16 %v856
    %v1540 = vunpack.c.l.b16 %v857
    %v1541 = vunpack.c.h.b16 %v857
    %v1542 = vunpack.c.l.b16 %v858
    %v1543 = vunpack.c.h.b16 %v858
    %v1544 = vunpack.c.l.b16 %v859
    %v1545 = vunpack.c.h.b16 %v859
    %v1546 = vunpack.c.l.b16 %v860
    %v1547 = vunpack.c.h.b16 %v860
    %v1548 = vunpack.c.l.b16 %v861
    %v1549 = vunpack.c.h.b16 %v861
    %v1550 = vunpack.c.l.b16 %v862
    %v1551 = vunpack.c.h.b16 %v862
    %v1552 = vunpack.c.l.b16 %v863
    %v1553 = vunpack.c.h.b16 %v863
    %v1554 = vunpack.c.l.b16 %v864
    %v1555 = vunpack.c.h.b16 %v864
    %v1556 = vunpack.c.l.b16 %v865
    %v1557 = vunpack.c.h.b16 %v865
    %v1558 = vunpack.c.l.b16 %v866
    %v1559 = vunpack.c.h.b16 %v866
    %v1560 = vunpack.c.l.b16 %v867
    %v1561 = vunpack.c.h.b16 %v867
    %v1562 = vunpack.c.l.b16 %v868
    %v1563 = vunpack.c.h.b16 %v868
    %v1564 = vunpack.c.l.b16 %v869
    %v1565 = vunpack.c.h.b16 %v869
    %v1566 = vunpack.c.l.b16 %v870
    %v1567 = vunpack.c.h.b16 %v870
    %v1568 = vunpack.c.l.b16 %v871
    %v1569 = vunpack.c.h.b16 %v871
    %v1570 = vunpack.c.l.b16 %v872
    %v1571 = vunpack.c.h.b16 %v872
    %v1572 = vunpack.c.l.b16 %v873
    %v1573 = vunpack.c.h.b16 %v873
    %v1574 = vunpack.c.l.b16 %v874
    %v1575 = vunpack.c.h.b16 %v874
    %v1576 = vunpack.c.l.b16 %v875
    %v1577 = vunpack.c.h.b16 %v875
    %v1578 = vunpack.c.l.b16 %v876
    %v1579 = vunpack.c.h.b16 %v876
    %v1580 = vunpack.c.l.b16 %v877
    %v1581 = vunpack.c.h.b16 %v877
    %v1582 = vunpack.c.l.b16 %v878
    %v1583 = vunpack.c.h.b16 %v878
    %v1584 = vunpack.c.l.b16 %v879
    %v1585 = vunpack.c.h.b16 %v879
    %v1586 = vunpack.c.l.b16 %v880
    %v1587 = vunpack.c.h.b16 %v880
    %v1588 = vunpack.c.l.b16 %v881
    %v1589 = vunpack.c.h.b16 %v881
    %v1590 = vunpack.c.l.b16 %v882
    %v1591 = vunpack.c.h.b16 %v882
    %v1592 = vunpack.c.l.b16 %v883
    %v1593 = vunpack.c.h.b16 %v883
    %v1594 = vunpack.c.l.b16 %v884
    %v1595 = vunpack.c.h.b16 %v884
    %v1596 = vunpack.c.l.b16 %v885
    %v1597 = vunpack.c.h.b16 %v885
    %v1598 = vunpack.c.l.b16 %v886
    %v1599 = vunpack.c.h.b16 %v886
    %v1600 = vunpack.c.l.b16 %v887
    %v1601 = vunpack.c.h.b16 %v887
    %v1602 = vunpack.c.l.b16 %v888
    %v1603 = vunpack.c.h.b16 %v888
    %v1604 = vunpack.c.l.b16 %v889
    %v1605 = vunpack.c.h.b16 %v889
    %v1606 = vunpack.c.l.b16 %v890
    %v1607 = vunpack.c.h.b16 %v890
    %v1608 = vunpack.c.l.b16 %v891
    %v1609 = vunpack.c.h.b16 %v891
    %v1610 = vunpack.c.l.b16 %v892
    %v1611 = vunpack.c.h.b16 %v892
    %v1612 = vunpack.c.l.b16 %v893
    %v1613 = vunpack.c.h.b16 %v893
    %v1614 = vunpack.c.l.b16 %v894
    %v1615 = vunpack.c.h.b16 %v894
    %v1616 = vunpack.c.l.b16 %v895
    %v1617 = vunpack.c.h.b16 %v895
    %v1618 = vunpack.c.l.b16 %v896
    %v1619 = vunpack.c.h.b16 %v896
    %v1620 = vunpack.c.l.b16 %v897
    %v1621 = vunpack.c.h.b16 %v897
    %v1622 = vunpack.c.l.b16 %v898
    %v1623 = vunpack.c.h.b16 %v898
    %v1624 = vunpack.c.l.b16 %v899
    %v1625 = vunpack.c.h.b16 %v899
    %v1626 = vunpack.c.l.b16 %v900
    %v1627 = vunpack.c.h.b16 %v900
    %v1628 = vunpack.c.l.b16 %v901
    %v1629 = vunpack.c.h.b16 %v901
    %v1630 = vunpack.c.l.b16 %v902
    %v1631 = vunpack.c.h.b16 %v902
    %v1632 = vunpack.c.l.b16 %v903
    %v1633 = vunpack.c.h.b16 %v903
    %v1634 = vunpack.c.l.b16 %v904
    %v1635 = vunpack.c.h.b16 %v904
    %v1636 = vunpack.c.l.b16 %v905
    %v1637 = vunpack.c.h.b16 %v905
    %v1638 = vunpack.c.l.b16 %v906
    %v1639 = vunpack.c.h.b16 %v906
    %v1640 = vunpack.c.l.b16 %v907
    %v1641 = vunpack.c.h.b16 %v907
    %v1642 = vunpack.c.l.b16 %v908
    %v1643 = vunpack.c.h.b16 %v908
    %v1644 = vunpack.c.l.b16 %v909
    %v1645 = vunpack.c.h.b16 %v909
    %v1646 = vunpack.c.l.b16 %v910
    %v1647 = vunpack.c.h.b16 %v910
    %v1648 = vunpack.c.l.b16 %v911
    %v1649 = vunpack.c.h.b16 %v911
    %v1650 = vunpack.c.l.b16 %v912
    %v1651 = vunpack.c.h.b16 %v912
    %v1652 = vunpack.c.l.b16 %v913
    %v1653 = vunpack.c.h.b16 %v913
    %v1654 = vunpack.c.l.b16 %v914
    %v1655 = vunpack.c.h.b16 %v914
    %v1656 = vunpack.c.l.b16 %v915
    %v1657 = vunpack.c.h.b16 %v915
    %v1658 = vunpack.c.l.b16 %v916
    %v1659 = vunpack.c.h.b16 %v916
    %v1660 = vunpack.c.l.b16 %v917
    %v1661 = vunpack.c.h.b16 %v917
    %v1662 = vunpack.c.l.b16 %v918
    %v1663 = vunpack.c.h.b16 %v918
    %v1664 = vunpack.c.l.b16 %v919
    %v1665 = vunpack.c.h.b16 %v919
    %v1666 = vunpack.c.l.b16 %v920
    %v1667 = vunpack.c.h.b16 %v920
    %v1668 = vunpack.c.l.b16 %v921
    %v1669 = vunpack.c.h.b16 %v921
    %v1670 = vunpack.c.l.b16 %v922
    %v1671 = vunpack.c.h.b16 %v922
    %v1672 = vunpack.c.l.b16 %v923
    %v1673 = vunpack.c.h.b16 %v923
    %v1674 = vunpack.c.l.b16 %v924
    %v1675 = vunpack.c.h.b16 %v924
    %v1676 = vunpack.c.l.b16 %v925
    %v1677 = vunpack.c.h.b16 %v925
    %v1678 = vunpack.c.l.b16 %v926
    %v1679 = vunpack.c.h.b16 %v926
    %v1680 = vunpack.c.l.b16 %v927
    %v1681 = vunpack.c.h.b16 %v927
    %v1682 = vunpack.c.l.b16 %v928
    %v1683 = vunpack.c.h.b16 %v928
    %v1684 = vunpack.c.l.b16 %v929
    %v1685 = vunpack.c.h.b16 %v929
    %v1686 = vunpack.c.l.b16 %v930
    %v1687 = vunpack.c.h.b16 %v930
    %v1688 = vunpack.c.l.b16 %v931
    %v1689 = vunpack.c.h.b16 %v931
    %v1690 = vunpack.c.l.b16 %v932
    %v1691 = vunpack.c.h.b16 %v932
    %v1692 = vunpack.c.l.b16 %v933
    %v1693 = vunpack.c.h.b16 %v933
    %v1694 = vunpack.c.l.b16 %v934
    %v1695 = vunpack.c.h.b16 %v934
    %v1696 = vunpack.c.l.b16 %v935
    %v1697 = vunpack.c.h.b16 %v935
    %v1698 = vunpack.c.l.b16 %v936
    %v1699 = vunpack.c.h.b16 %v936
    %v1700 = vunpack.c.l.b16 %v937
    %v1701 = vunpack.c.h.b16 %v937
    %v1702 = vunpack.c.l.b16 %v938
    %v1703 = vunpack.c.h.b16 %v938
    %v1704 = vunpack.c.l.b16 %v939
    %v1705 = vunpack.c.h.b16 %v939
    %v1706 = vunpack.c.l.b16 %v940
    %v1707 = vunpack.c.h.b16 %v940
    %v1708 = vunpack.c.l.b16 %v941
    %v1709 = vunpack.c.h.b16 %v941
    %v1710 = vunpack.c.l.b16 %v942
    %v1711 = vunpack.c.h.b16 %v942
    %v1712 = vunpack.c.l.b16 %v943
    %v1713 = vunpack.c.h.b16 %v943
    %v1714 = vunpack.c.l.b16 %v944
    %v1715 = vunpack.c.h.b16 %v944
    %v1716 = vunpack.c.l.b16 %v945
    %v1717 = vunpack.c.h.b16 %v945
    %v1718 = vunpack.c.l.b16 %v946
    %v1719 = vunpack.c.h.b16 %v946
    %v1720 = vunpack.c.l.b16 %v947
    %v1721 = vunpack.c.h.b16 %v947
    %v1722 = vunpack.c.l.b16 %v948
    %v1723 = vunpack.c.h.b16 %v948
    %v1724 = vunpack.c.l.b16 %v949
    %v1725 = vunpack.c.h.b16 %v949
    %v1726 = vunpack.c.l.b16 %v950
    %v1727 = vunpack.c.h.b16 %v950
    %v1728 = vunpack.c.l.b16 %v951
    %v1729 = vunpack.c.h.b16 %v951
    %v1730 = vunpack.c.l.b16 %v952
    %v1731 = vunpack.c.h.b16 %v952
    %v1732 = vunpack.c.l.b16 %v953
    %v1733 = vunpack.c.h.b16 %v953
    %v1734 = vunpack.c.l.b16 %v954
    %v1735 = vunpack.c.h.b16 %v954
    %v1736 = vunpack.c.l.b16 %v955
    %v1737 = vunpack.c.h.b16 %v955
    %v1738 = vunpack.c.l.b16 %v956
    %v1739 = vunpack.c.h.b16 %v956
    %v1740 = vunpack.c.l.b16 %v957
    %v1741 = vunpack.c.h.b16 %v957
    %v1742 = vunpack.c.l.b16 %v958
    %v1743 = vunpack.c.h.b16 %v958
    %v1744 = vunpack.c.l.b16 %v959
    %v1745 = vunpack.c.h.b16 %v959
    %v1746 = vunpack.c.l.b16 %v960
    %v1747 = vunpack.c.h.b16 %v960
    %v1748 = vunpack.c.l.b16 %v961
    %v1749 = vunpack.c.h.b16 %v961
    %v1750 = vunpack.c.l.b16 %v962
    %v1751 = vunpack.c.h.b16 %v962
    %v1752 = vunpack.c.l.b16 %v963
    %v1753 = vunpack.c.h.b16 %v963
    %v1754 = vunpack.c.l.b16 %v964
    %v1755 = vunpack.c.h.b16 %v964
    %v1756 = vunpack.c.l.b16 %v965
    %v1757 = vunpack.c.h.b16 %v965
    %v1758 = vunpack.c.l.b16 %v966
    %v1759 = vunpack.c.h.b16 %v966
    %v1760 = vunpack.c.l.b16 %v967
    %v1761 = vunpack.c.h.b16 %v967
    %v1762 = vunpack.c.l.b16 %v968
    %v1763 = vunpack.c.h.b16 %v968
    %v1764 = vunpack.c.l.b16 %v969
    %v1765 = vunpack.c.h.b16 %v969
    %v1766 = vunpack.c.l.b16 %v970
    %v1767 = vunpack.c.h.b16 %v970
    %v1768 = vunpack.c.l.b16 %v971
    %v1769 = vunpack.c.h.b16 %v971
    %v1770 = vunpack.c.l.b16 %v972
    %v1771 = vunpack.c.h.b16 %v972
    %v1772 = vunpack.c.l.b16 %v973
    %v1773 = vunpack.c.h.b16 %v973
    %v1774 = vunpack.c.l.b16 %v974
    %v1775 = vunpack.c.h.b16 %v974
    %v1776 = vunpack.c.l.b16 %v975
    %v1777 = vunpack.c.h.b16 %v975
    %v1778 = vunpack.c.l.b16 %v976
    %v1779 = vunpack.c.h.b16 %v976
    %v1780 = vunpack.c.l.b16 %v977
    %v1781 = vunpack.c.h.b16 %v977
    %v1782 = vunpack.c.l.b16 %v978
    %v1783 = vunpack.c.h.b16 %v978
    %v1784 = vunpack.c.l.b16 %v979
    %v1785 = vunpack.c.h.b16 %v979
    %v1786 = vunpack.c.l.b16 %v980
    %v1787 = vunpack.c.h.b16 %v980
    %v1788 = vunpack.c.l.b16 %v981
    %v1789 = vunpack.c.h.b16 %v981
    %v1790 = vunpack.c.l.b16 %v982
    %v1791 = vunpack.c.h.b16 %v982
    %v1792 = vunpack.c.l.b16 %v983
    %v1793 = vunpack.c.h.b16 %v983
    %v1794 = vpack.c.b16 %v1290, %v1282
    %v1795 = vpack.c.b16 %v1291, %v1283
    %v1796 = vpack.c.b16 %v1292, %v1284
    %v1797 = vpack.c.b16 %v1293, %v1285
    %v1798 = vpack.c.b16 %v1294, %v1286
    %v1799 = vpack.c.b16 %v1295, %v1287
    %v1800 = vpack.c.b16 %v1296, %v1288
    %v1801 = vpack.c.b16 %v1297, %v1289
    %v1802 = vpack.c.b16 %v1306, %v1298
    %v1803 = vpack.c.b16 %v1307, %v1299
    %v1804 = vpack.c.b16 %v1308, %v1300
    %v1805 = vpack.c.b16 %v1309, %v1301
    %v1806 = vpack.c.b16 %v1310, %v1302
    %v1807 = vpack.c.b16 %v1311, %v1303
    %v1808 = vpack.c.b16 %v1312, %v1304
    %v1809 = vpack.c.b16 %v1313, %v1305
    %v1810 = vpack.c.b16 %v1322, %v1314
    %v1811 = vpack.c.b16 %v1323, %v1315
    %v1812 = vpack.c.b16 %v1324, %v1316
    %v1813 = vpack.c.b16 %v1325, %v1317
    %v1814 = vpack.c.b16 %v1326, %v1318
    %v1815 = vpack.c.b16 %v1327, %v1319
    %v1816 = vpack.c.b16 %v1328, %v1320
    %v1817 = vpack.c.b16 %v1329, %v1321
    %v1818 = vpack.c.b16 %v1338, %v1330
    %v1819 = vpack.c.b16 %v1339, %v1331
    %v1820 = vpack.c.b16 %v1340, %v1332
    %v1821 = vpack.c.b16 %v1341, %v1333
    %v1822 = vpack.c.b16 %v1342, %v1334
    %v1823 = vpack.c.b16 %v1343, %v1335
    %v1824 = vpack.c.b16 %v1344, %v1336
    %v1825 = vpack.c.b16 %v1345, %v1337
    %v1826 = vpack.c.b16 %v1354, %v1346
    %v1827 = vpack.c.b16 %v1355, %v1347
    %v1828 = vpack.c.b16 %v1356, %v1348
    %v1829 = vpack.c.b16 %v1357, %v1349
    %v1830 = vpack.c.b16 %v1358, %v1350
    %v1831 = vpack.c.b16 %v1359, %v1351
    %v1832 = vpack.c.b16 %v1360, %v1352
    %v1833 = vpack.c.b16 %v1361, %v1353
    %v1834 = vpack.c.b16 %v1370, %v1362
    %v1835 = vpack.c.b16 %v1371, %v1363
    %v1836 = vpack.c.b16 %v1372, %v1364
    %v1837 = vpack.c.b16 %v1373, %v1365
    %v1838 = vpack.c.b16 %v1374, %v1366
    %v1839 = vpack.c.b16 %v1375, %v1367
    %v1840 = vpack.c.b16 %v1376, %v1368
    %v1841 = vpack.c.b16 %v1377, %v1369
    %v1842 = vpack.c.b16 %v1386, %v1378
    %v1843 = vpack.c.b16 %v1387, %v1379
    %v1844 = vpack.c.b16 %v1388, %v1380
    %v1845 = vpack.c.b16 %v1389, %v1381
    %v1846 = vpack.c.b16 %v1390, %v1382
    %v1847 = vpack.c.b16 %v1391, %v1383
    %v1848 = vpack.c.b16 %v1392, %v1384
    %v1849 = vpack.c.b16 %v1393, %v1385
    %v1850 = vpack.c.b16 %v1402, %v1394
    %v1851 = vpack.c.b16 %v1403, %v1395
    %v1852 = vpack.c.b16 %v1404, %v1396
    %v1853 = vpack.c.b16 %v1405, %v1397
    %v1854 = vpack.c.b16 %v1406, %v1398
    %v1855 = vpack.c.b16 %v1407, %v1399
    %v1856 = vpack.c.b16 %v1408, %v1400
    %v1857 = vpack.c.b16 %v1409, %v1401
    %v1858 = vpack.c.b16 %v1418, %v1410
    %v1859 = vpack.c.b16 %v1419, %v1411
    %v1860 = vpack.c.b16 %v1420, %v1412
    %v1861 = vpack.c.b16 %v1421, %v1413
    %v1862 = vpack.c.b16 %v1422, %v1414
    %v1863 = vpack.c.b16 %v1423, %v1415
    %v1864 = vpack.c.b16 %v1424, %v1416
    %v1865 = vpack.c.b16 %v1425, %v1417
    %v1866 = vpack.c.b16 %v1434, %v1426
    %v1867 = vpack.c.b16 %v1435, %v1427
    %v1868 = vpack.c.b16 %v1436, %v1428
    %v1869 = vpack.c.b16 %v1437, %v1429
    %v1870 = vpack.c.b16 %v1438, %v1430
    %v1871 = vpack.c.b16 %v1439, %v1431
    %v1872 = vpack.c.b16 %v1440, %v1432
    %v1873 = vpack.c.b16 %v1441, %v1433
    %v1874 = vpack.c.b16 %v1450, %v1442
    %v1875 = vpack.c.b16 %v1451, %v1443
    %v1876 = vpack.c.b16 %v1452, %v1444
    %v1877 = vpack.c.b16 %v1453, %v1445
    %v1878 = vpack.c.b16 %v1454, %v1446
    %v1879 = vpack.c.b16 %v1455, %v1447
    %v1880 = vpack.c.b16 %v1456, %v1448
    %v1881 = vpack.c.b16 %v1457, %v1449
    %v1882 = vpack.c.b16 %v1466, %v1458
    %v1883 = vpack.c.b16 %v1467, %v1459
    %v1884 = vpack.c.b16 %v1468, %v1460
    %v1885 = vpack.c.b16 %v1469, %v1461
    %v1886 = vpack.c.b16 %v1470, %v1462
    %v1887 = vpack.c.b16 %v1471, %v1463
    %v1888 = vpack.c.b16 %v1472, %v1464
    %v1889 = vpack.c.b16 %v1473, %v1465
    %v1890 = vpack.c.b16 %v1482, %v1474
    %v1891 = vpack.c.b16 %v1483, %v1475
    %v1892 = vpack.c.b16 %v1484, %v1476
    %v1893 = vpack.c.b16 %v1485, %v1477
    %v1894 = vpack.c.b16 %v1486, %v1478
    %v1895 = vpack.c.b16 %v1487, %v1479
    %v1896 = vpack.c.b16 %v1488, %v1480
    %v1897 = vpack.c.b16 %v1489, %v1481
    %v1898 = vpack.c.b16 %v1498, %v1490
    %v1899 = vpack.c.b16 %v1499, %v1491
    %v1900 = vpack.c.b16 %v1500, %v1492
    %v1901 = vpack.c.b16 %v1501, %v1493
    %v1902 = vpack.c.b16 %v1502, %v1494
    %v1903 = vpack.c.b16 %v1503, %v1495
    %v1904 = vpack.c.b16 %v1504, %v1496
    %v1905 = vpack.c.b16 %v1505, %v1497
    %v1906 = vpack.c.b16 %v1514, %v1506
    %v1907 = vpack.c.b16 %v1515, %v1507
    %v1908 = vpack.c.b16 %v1516, %v1508
    %v1909 = vpack.c.b16 %v1517, %v1509
    %v1910 = vpack.c.b16 %v1518, %v1510
    %v1911 = vpack.c.b16 %v1519, %v1511
    %v1912 = vpack.c.b16 %v1520, %v1512
    %v1913 = vpack.c.b16 %v1521, %v1513
    %v1914 = vpack.c.b16 %v1530, %v1522
    %v1915 = vpack.c.b16 %v1531, %v1523
    %v1916 = vpack.c.b16 %v1532, %v1524
    %v1917 = vpack.c.b16 %v1533, %v1525
    %v1918 = vpack.c.b16 %v1534, %v1526
    %v1919 = vpack.c.b16 %v1535, %v1527
    %v1920 = vpack.c.b16 %v1536, %v1528
    %v1921 = vpack.c.b16 %v1537, %v1529
    %v1922 = vpack.c.b16 %v1546, %v1538
    %v1923 = vpack.c.b16 %v1547, %v1539
    %v1924 = vpack.c.b16 %v1548, %v1540
    %v1925 = vpack.c.b16 %v1549, %v1541
    %v1926 = vpack.c.b16 %v1550, %v1542
    %v1927 = vpack.c.b16 %v1551, %v1543
    %v1928 = vpack.c.b16 %v1552, %v1544
    %v1929 = vpack.c.b16 %v1553, %v1545
    %v1930 = vpack.c.b16 %v1562, %v1554
    %v1931 = vpack.c.b16 %v1563, %v1555
    %v1932 = vpack.c.b16 %v1564, %v1556
    %v1933 = vpack.c.b16 %v1565, %v1557
    %v1934 = vpack.c.b16 %v1566, %v1558
    %v1935 = vpack.c.b16 %v1567, %v1559
    %v1936 = vpack.c.b16 %v1568, %v1560
    %v1937 = vpack.c.b16 %v1569, %v1561
    %v1938 = vpack.c.b16 %v1578, %v1570
    %v1939 = vpack.c.b16 %v1579, %v1571
    %v1940 = vpack.c.b16 %v1580, %v1572
    %v1941 = vpack.c.b16 %v1581, %v1573
    %v1942 = vpack.c.b16 %v1582, %v1574
    %v1943 = vpack.c.b16 %v1583, %v1575
    %v1944 = vpack.c.b16 %v1584, %v1576
    %v1945 = vpack.c.b16 %v1585, %v1577
    %v1946 = vpack.c.b16 %v1594, %v1586
    %v1947 = vpack.c.b16 %v1595, %v1587
    %v1948 = vpack.c.b16 %v1596, %v1588
    %v1949 = vpack.c.b16 %v1597, %v1589
    %v1950 = vpack.c.b16 %v1598, %v1590
    %v1951 = vpack.c.b16 %v1599, %v1591
    %v1952 = vpack.c.b16 %v1600, %v1592
    %v1953 = vpack.c.b16 %v1601, %v1593
    %v1954 = vpack.c.b16 %v1610, %v1602
    %v1955 = vpack.c.b16 %v1611, %v1603
    %v1956 = vpack.c.b16 %v1612, %v1604
    %v1957 = vpack.c.b16 %v1613, %v1605
    %v1958 = vpack.c.b16 %v1614, %v1606
    %v1959 = vpack.c.b16 %v1615, %v1607
    %v1960 = vpack.c.b16 %v1616, %v1608
    %v1961 = vpack.c.b16 %v1617, %v1609
    %v1962 = vpack.c.b16 %v1626, %v1618
    %v1963 = vpack.c.b16 %v1627, %v1619
    %v1964 = vpack.c.b16 %v1628, %v1620
    %v1965 = vpack.c.b16 %v1629, %v1621
    %v1966 = vpack.c.b16 %v1630, %v1622
    %v1967 = vpack.c.b16 %v1631, %v1623
    %v1968 = vpack.c.b16 %v1632, %v1624
    %v1969 = vpack.c.b16 %v1633, %v1625
    %v1970 = vpack.c.b16 %v1642, %v1634
    %v1971 = vpack.c.b16 %v1643, %v1635
    %v1972 = vpack.c.b16 %v1644, %v1636
    %v1973 = vpack.c.b16 %v1645, %v1637
    %v1974 = vpack.c.b16 %v1646, %v1638
    %v1975 = vpack.c.b16 %v1647, %v1639
    %v1976 = vpack.c.b16 %v1648, %v1640
    %v1977 = vpack.c.b16 %v1649, %v1641
    %v1978 = vpack.c.b16 %v1658, %v1650
    %v1979 = vpack.c.b16 %v1659, %v1651
    %v1980 = vpack.c.b16 %v1660, %v1652
    %v1981 = vpack.c.b16 %v1661, %v1653
    %v1982 = vpack.c.b16 %v1662, %v1654
    %v1983 = vpack.c.b16 %v1663, %v1655
    %v1984 = vpack.c.b16 %v1664, %v1656
    %v1985 = vpack.c.b16 %v1665, %v1657
    %v1986 = vpack.c.b16 %v1674, %v1666
    %v1987 = vpack.c.b16 %v1675, %v1667
    %v1988 = vpack.c.b16 %v1676, %v1668
    %v1989 = vpack.c.b16 %v1677, %v1669
    %v1990 = vpack.c.b16 %v1678, %v1670
    %v1991 = vpack.c.b16 %v1679, %v1671
    %v1992 = vpack.c.b16 %v1680, %v1672
    %v1993 = vpack.c.b16 %v1681, %v1673
    %v1994 = vpack.c.b16 %v1690, %v1682
    %v1995 = vpack.c.b16 %v1691, %v1683
    %v1996 = vpack.c.b16 %v1692, %v1684
    %v1997 = vpack.c.b16 %v1693, %v1685
    %v1998 = vpack.c.b16 %v1694, %v1686
    %v1999 = vpack.c.b16 %v1695, %v1687
    %v2000 = vpack.c.b16 %v1696, %v1688
    %v2001 = vpack.c.b16 %v1697, %v1689
    %v2002 = vpack.c.b16 %v1706, %v1698
    %v2003 = vpack.c.b16 %v1707, %v1699
    %v2004 = vpack.c.b16 %v1708, %v1700
    %v2005 = vpack.c.b16 %v1709, %v1701
    %v2006 = vpack.c.b16 %v1710, %v1702
    %v2007 = vpack.c.b16 %v1711, %v1703
    %v2008 = vpack.c.b16 %v1712, %v1704
    %v2009 = vpack.c.b16 %v1713, %v1705
    %v2010 = vpack.c.b16 %v1722, %v1714
    %v2011 = vpack.c.b16 %v1723, %v1715
    %v2012 = vpack.c.b16 %v1724, %v1716
    %v2013 = vpack.c.b16 %v1725, %v1717
    %v2014 = vpack.c.b16 %v1726, %v1718
    %v2015 = vpack.c.b16 %v1727, %v1719
    %v2016 = vpack.c.b16 %v1728, %v1720
    %v2017 = vpack.c.b16 %v1729, %v1721
    %v2018 = vpack.c.b16 %v1738, %v1730
    %v2019 = vpack.c.b16 %v1739, %v1731
    %v2020 = vpack.c.b16 %v1740, %v1732
    %v2021 = vpack.c.b16 %v1741, %v1733
    %v2022 = vpack.c.b16 %v1742, %v1734
    %v2023 = vpack.c.b16 %v1743, %v1735
    %v2024 = vpack.c.b16 %v1744, %v1736
    %v2025 = vpack.c.b16 %v1745, %v1737
    %v2026 = vpack.c.b16 %v1754, %v1746
    %v2027 = vpack.c.b16 %v1755, %v1747
    %v2028 = vpack.c.b16 %v1756, %v1748
    %v2029 = vpack.c.b16 %v1757, %v1749
    %v2030 = vpack.c.b16 %v1758, %v1750
    %v2031 = vpack.c.b16 %v1759, %v1751
    %v2032 = vpack.c.b16 %v1760, %v1752
    %v2033 = vpack.c.b16 %v1761, %v1753
    %v2034 = vpack.c.b16 %v1770, %v1762
    %v2035 = vpack.c.b16 %v1771, %v1763
    %v2036 = vpack.c.b16 %v1772, %v1764
    %v2037 = vpack.c.b16 %v1773, %v1765
    %v2038 = vpack.c.b16 %v1774, %v1766
    %v2039 = vpack.c.b16 %v1775, %v1767
    %v2040 = vpack.c.b16 %v1776, %v1768
    %v2041 = vpack.c.b16 %v1777, %v1769
    %v2042 = vpack.c.b16 %v1786, %v1778
    %v2043 = vpack.c.b16 %v1787, %v1779
    %v2044 = vpack.c.b16 %v1788, %v1780
    %v2045 = vpack.c.b16 %v1789, %v1781
    %v2046 = vpack.c.b16 %v1790, %v1782
    %v2047 = vpack.c.b16 %v1791, %v1783
    %v2048 = vpack.c.b16 %v1792, %v1784
    %v2049 = vpack.c.b16 %v1793, %v1785
    %2306 = vmatprep.subr.bf16.mxu0 %v1795
    %2307 = vmatpush1.bf16.msra.mxu0 %v1794
    %2308 = vmatprep.subr.bf16.mxu0 %v1803
    %2309 = vmatpush1.bf16.msra.mxu0 %v1802
    %2310 = vmatprep.subr.bf16.mxu0 %v1811
    %2311 = vmatpush1.bf16.msra.mxu0 %v1810
    %2312 = vmatprep.subr.bf16.mxu0 %v1819
    %2313 = vmatpush1.bf16.msra.mxu0 %v1818
    %2314 = vmatprep.subr.bf16.mxu0 %v1827
    %2315 = vmatpush1.bf16.msra.mxu0 %v1826
    %2316 = vmatprep.subr.bf16.mxu0 %v1835
    %2317 = vmatpush1.bf16.msra.mxu0 %v1834
    %2318 = vmatprep.subr.bf16.mxu0 %v1843
    %2319 = vmatpush1.bf16.msra.mxu0 %v1842
    %2320 = vmatprep.subr.bf16.mxu0 %v1851
    %2321 = vmatpush1.bf16.msra.mxu0 %v1850
    %2322 = vmatprep.subr.bf16.mxu0 %v1859
    %2323 = vmatpush1.bf16.msra.mxu0 %v1858
    %2324 = vmatprep.subr.bf16.mxu0 %v1867
    %2325 = vmatpush1.bf16.msra.mxu0 %v1866
    %2326 = vmatprep.subr.bf16.mxu0 %v1875
    %2327 = vmatpush1.bf16.msra.mxu0 %v1874
    %2328 = vmatprep.subr.bf16.mxu0 %v1883
    %2329 = vmatpush1.bf16.msra.mxu0 %v1882
    %2330 = vmatprep.subr.bf16.mxu0 %v1891
    %2331 = vmatpush1.bf16.msra.mxu0 %v1890
    %2332 = vmatprep.subr.bf16.mxu0 %v1899
    %2333 = vmatpush1.bf16.msra.mxu0 %v1898
    %2334 = vmatprep.subr.bf16.mxu0 %v1907
    %2335 = vmatpush1.bf16.msra.mxu0 %v1906
    %2336 = vmatprep.subr.bf16.mxu0 %v1915
    %2337 = vmatpush1.bf16.msra.mxu0 %v1914
    %2338 = vmatprep.mubr.bf16.mxu0 %v725
    %2339 = vmatmul.mubr.bf16.gmra.mrb[0].mxu0 %v724
    %v2340 = vpop.f32.mrb[0].mxu0
    %v2341 = vadd.f32 %v989, %v2340
    %v2342 = vpop.f32.mrb[0].mxu0
    %v2343 = vadd.f32 %v993, %v2342
    %v2344 = vpop.f32.mrb[0].mxu0
    %v2345 = vpop.f32.mrb[0].mxu0
    %2346 = vdwg.mxu0
    %2347 = vmatprep.subr.bf16.mxu0 %v1923
    %2348 = vmatpush1.bf16.msra.mxu0 %v1922
    %2349 = vmatprep.subr.bf16.mxu0 %v1931
    %2350 = vmatpush1.bf16.msra.mxu0 %v1930
    %2351 = vmatprep.subr.bf16.mxu0 %v1939
    %2352 = vmatpush1.bf16.msra.mxu0 %v1938
    %2353 = vmatprep.subr.bf16.mxu0 %v1947
    %2354 = vmatpush1.bf16.msra.mxu0 %v1946
    %2355 = vmatprep.subr.bf16.mxu0 %v1955
    %2356 = vmatpush1.bf16.msra.mxu0 %v1954
    %2357 = vmatprep.subr.bf16.mxu0 %v1963
    %2358 = vmatpush1.bf16.msra.mxu0 %v1962
    %2359 = vmatprep.subr.bf16.mxu0 %v1971
    %2360 = vmatpush1.bf16.msra.mxu0 %v1970
    %2361 = vmatprep.subr.bf16.mxu0 %v1979
    %2362 = vmatpush1.bf16.msra.mxu0 %v1978
    %2363 = vmatprep.subr.bf16.mxu0 %v1987
    %2364 = vmatpush1.bf16.msra.mxu0 %v1986
    %2365 = vmatprep.subr.bf16.mxu0 %v1995
    %2366 = vmatpush1.bf16.msra.mxu0 %v1994
    %2367 = vmatprep.subr.bf16.mxu0 %v2003
    %2368 = vmatpush1.bf16.msra.mxu0 %v2002
    %2369 = vmatprep.subr.bf16.mxu0 %v2011
    %2370 = vmatpush1.bf16.msra.mxu0 %v2010
    %2371 = vmatprep.subr.bf16.mxu0 %v2019
    %2372 = vmatpush1.bf16.msra.mxu0 %v2018
    %2373 = vmatprep.subr.bf16.mxu0 %v2027
    %2374 = vmatpush1.bf16.msra.mxu0 %v2026
    %2375 = vmatprep.subr.bf16.mxu0 %v2035
    %2376 = vmatpush1.bf16.msra.mxu0 %v2034
    %2377 = vmatprep.subr.bf16.mxu0 %v2043
    %2378 = vmatpush1.bf16.msra.mxu0 %v2042
    %2379 = vmatprep.mubr.bf16.mxu0 %v727
    %2380 = vmatmul.mubr.bf16.gmra.mrb[0].mxu0 %v726
    %v2381 = vpop.f32.mrb[0].mxu0
    %v2382 = vadd.f32 %v2341, %v2381
    %v2383 = vpop.f32.mrb[0].mxu0
    %v2384 = vadd.f32 %v2343, %v2383
    %v2385 = vpop.f32.mrb[0].mxu0
    %v2386 = vpop.f32.mrb[0].mxu0
    %2387 = vdwg.mxu0
    %2388 = vmatprep.subr.bf16.mxu0 %v1797
    %2389 = vmatpush1.bf16.msra.mxu0 %v1796
    %2390 = vmatprep.subr.bf16.mxu0 %v1805
    %2391 = vmatpush1.bf16.msra.mxu0 %v1804
    %2392 = vmatprep.subr.bf16.mxu0 %v1813
    %2393 = vmatpush1.bf16.msra.mxu0 %v1812
    %2394 = vmatprep.subr.bf16.mxu0 %v1821
    %2395 = vmatpush1.bf16.msra.mxu0 %v1820
    %2396 = vmatprep.subr.bf16.mxu0 %v1829
    %2397 = vmatpush1.bf16.msra.mxu0 %v1828
    %2398 = vmatprep.subr.bf16.mxu0 %v1837
    %2399 = vmatpush1.bf16.msra.mxu0 %v1836
    %2400 = vmatprep.subr.bf16.mxu0 %v1845
    %2401 = vmatpush1.bf16.msra.mxu0 %v1844
    %2402 = vmatprep.subr.bf16.mxu0 %v1853
    %2403 = vmatpush1.bf16.msra.mxu0 %v1852
    %2404 = vmatprep.subr.bf16.mxu0 %v1861
    %2405 = vmatpush1.bf16.msra.mxu0 %v1860
    %2406 = vmatprep.subr.bf16.mxu0 %v1869
    %2407 = vmatpush1.bf16.msra.mxu0 %v1868
    %2408 = vmatprep.subr.bf16.mxu0 %v1877
    %2409 = vmatpush1.bf16.msra.mxu0 %v1876
    %2410 = vmatprep.subr.bf16.mxu0 %v1885
    %2411 = vmatpush1.bf16.msra.mxu0 %v1884
    %2412 = vmatprep.subr.bf16.mxu0 %v1893
    %2413 = vmatpush1.bf16.msra.mxu0 %v1892
    %2414 = vmatprep.subr.bf16.mxu0 %v1901
    %2415 = vmatpush1.bf16.msra.mxu0 %v1900
    %2416 = vmatprep.subr.bf16.mxu0 %v1909
    %2417 = vmatpush1.bf16.msra.mxu0 %v1908
    %2418 = vmatprep.subr.bf16.mxu0 %v1917
    %2419 = vmatpush1.bf16.msra.mxu0 %v1916
    %2420 = vmatprep.mubr.bf16.mxu0 %v725
    %2421 = vmatmul.mubr.bf16.gmra.mrb[0].mxu0 %v724
    %v2422 = vpop.f32.mrb[0].mxu0
    %v2423 = vadd.f32 %v997, %v2422
    %v2424 = vpop.f32.mrb[0].mxu0
    %v2425 = vadd.f32 %v1001, %v2424
    %v2426 = vpop.f32.mrb[0].mxu0
    %v2427 = vpop.f32.mrb[0].mxu0
    %2428 = vdwg.mxu0
    %2429 = vmatprep.subr.bf16.mxu0 %v1925
    %2430 = vmatpush1.bf16.msra.mxu0 %v1924
    %2431 = vmatprep.subr.bf16.mxu0 %v1933
    %2432 = vmatpush1.bf16.msra.mxu0 %v1932
    %2433 = vmatprep.subr.bf16.mxu0 %v1941
    %2434 = vmatpush1.bf16.msra.mxu0 %v1940
    %2435 = vmatprep.subr.bf16.mxu0 %v1949
    %2436 = vmatpush1.bf16.msra.mxu0 %v1948
    %2437 = vmatprep.subr.bf16.mxu0 %v1957
    %2438 = vmatpush1.bf16.msra.mxu0 %v1956
    %2439 = vmatprep.subr.bf16.mxu0 %v1965
    %2440 = vmatpush1.bf16.msra.mxu0 %v1964
    %2441 = vmatprep.subr.bf16.mxu0 %v1973
    %2442 = vmatpush1.bf16.msra.mxu0 %v1972
    %2443 = vmatprep.subr.bf16.mxu0 %v1981
    %2444 = vmatpush1.bf16.msra.mxu0 %v1980
    %2445 = vmatprep.subr.bf16.mxu0 %v1989
    %2446 = vmatpush1.bf16.msra.mxu0 %v1988
    %2447 = vmatprep.subr.bf16.mxu0 %v1997
    %2448 = vmatpush1.bf16.msra.mxu0 %v1996
    %2449 = vmatprep.subr.bf16.mxu0 %v2005
    %2450 = vmatpush1.bf16.msra.mxu0 %v2004
    %2451 = vmatprep.subr.bf16.mxu0 %v2013
    %2452 = vmatpush1.bf16.msra.mxu0 %v2012
    %2453 = vmatprep.subr.bf16.mxu0 %v2021
    %2454 = vmatpush1.bf16.msra.mxu0 %v2020
    %2455 = vmatprep.subr.bf16.mxu0 %v2029
    %2456 = vmatpush1.bf16.msra.mxu0 %v2028
    %2457 = vmatprep.subr.bf16.mxu0 %v2037
    %2458 = vmatpush1.bf16.msra.mxu0 %v2036
    %2459 = vmatprep.subr.bf16.mxu0 %v2045
    %2460 = vmatpush1.bf16.msra.mxu0 %v2044
    %2461 = vmatprep.mubr.bf16.mxu0 %v727
    %2462 = vmatmul.mubr.bf16.gmra.mrb[0].mxu0 %v726
    %v2463 = vpop.f32.mrb[0].mxu0
    %v2464 = vadd.f32 %v2423, %v2463
    %v2465 = vpop.f32.mrb[0].mxu0
    %v2466 = vadd.f32 %v2425, %v2465
    %v2467 = vpop.f32.mrb[0].mxu0
    %v2468 = vpop.f32.mrb[0].mxu0
    %2469 = vdwg.mxu0
    %2470 = vmatprep.subr.bf16.mxu0 %v1799
    %2471 = vmatpush1.bf16.msra.mxu0 %v1798
    %2472 = vmatprep.subr.bf16.mxu0 %v1807
    %2473 = vmatpush1.bf16.msra.mxu0 %v1806
    %2474 = vmatprep.subr.bf16.mxu0 %v1815
    %2475 = vmatpush1.bf16.msra.mxu0 %v1814
    %2476 = vmatprep.subr.bf16.mxu0 %v1823
    %2477 = vmatpush1.bf16.msra.mxu0 %v1822
    %2478 = vmatprep.subr.bf16.mxu0 %v1831
    %2479 = vmatpush1.bf16.msra.mxu0 %v1830
    %2480 = vmatprep.subr.bf16.mxu0 %v1839
    %2481 = vmatpush1.bf16.msra.mxu0 %v1838
    %2482 = vmatprep.subr.bf16.mxu0 %v1847
    %2483 = vmatpush1.bf16.msra.mxu0 %v1846
    %2484 = vmatprep.subr.bf16.mxu0 %v1855
    %2485 = vmatpush1.bf16.msra.mxu0 %v1854
    %2486 = vmatprep.subr.bf16.mxu0 %v1863
    %2487 = vmatpush1.bf16.msra.mxu0 %v1862
    %2488 = vmatprep.subr.bf16.mxu0 %v1871
    %2489 = vmatpush1.bf16.msra.mxu0 %v1870
    %2490 = vmatprep.subr.bf16.mxu0 %v1879
    %2491 = vmatpush1.bf16.msra.mxu0 %v1878
    %2492 = vmatprep.subr.bf16.mxu0 %v1887
    %2493 = vmatpush1.bf16.msra.mxu0 %v1886
    %2494 = vmatprep.subr.bf16.mxu0 %v1895
    %2495 = vmatpush1.bf16.msra.mxu0 %v1894
    %2496 = vmatprep.subr.bf16.mxu0 %v1903
    %2497 = vmatpush1.bf16.msra.mxu0 %v1902
    %2498 = vmatprep.subr.bf16.mxu0 %v1911
    %2499 = vmatpush1.bf16.msra.mxu0 %v1910
    %2500 = vmatprep.subr.bf16.mxu0 %v1919
    %2501 = vmatpush1.bf16.msra.mxu0 %v1918
    %2502 = vmatprep.mubr.bf16.mxu0 %v725
    %2503 = vmatmul.mubr.bf16.gmra.mrb[0].mxu0 %v724
    %v2504 = vpop.f32.mrb[0].mxu0
    %v2505 = vadd.f32 %v1005, %v2504
    %v2506 = vpop.f32.mrb[0].mxu0
    %v2507 = vadd.f32 %v1009, %v2506
    %v2508 = vpop.f32.mrb[0].mxu0
    %v2509 = vpop.f32.mrb[0].mxu0
    %2510 = vdwg.mxu0
    %2511 = vmatprep.subr.bf16.mxu0 %v1927
    %2512 = vmatpush1.bf16.msra.mxu0 %v1926
    %2513 = vmatprep.subr.bf16.mxu0 %v1935
    %2514 = vmatpush1.bf16.msra.mxu0 %v1934
    %2515 = vmatprep.subr.bf16.mxu0 %v1943
    %2516 = vmatpush1.bf16.msra.mxu0 %v1942
    %2517 = vmatprep.subr.bf16.mxu0 %v1951
    %2518 = vmatpush1.bf16.msra.mxu0 %v1950
    %2519 = vmatprep.subr.bf16.mxu0 %v1959
    %2520 = vmatpush1.bf16.msra.mxu0 %v1958
    %2521 = vmatprep.subr.bf16.mxu0 %v1967
    %2522 = vmatpush1.bf16.msra.mxu0 %v1966
    %2523 = vmatprep.subr.bf16.mxu0 %v1975
    %2524 = vmatpush1.bf16.msra.mxu0 %v1974
    %2525 = vmatprep.subr.bf16.mxu0 %v1983
    %2526 = vmatpush1.bf16.msra.mxu0 %v1982
    %2527 = vmatprep.subr.bf16.mxu0 %v1991
    %2528 = vmatpush1.bf16.msra.mxu0 %v1990
    %2529 = vmatprep.subr.bf16.mxu0 %v1999
    %2530 = vmatpush1.bf16.msra.mxu0 %v1998
    %2531 = vmatprep.subr.bf16.mxu0 %v2007
    %2532 = vmatpush1.bf16.msra.mxu0 %v2006
    %2533 = vmatprep.subr.bf16.mxu0 %v2015
    %2534 = vmatpush1.bf16.msra.mxu0 %v2014
    %2535 = vmatprep.subr.bf16.mxu0 %v2023
    %2536 = vmatpush1.bf16.msra.mxu0 %v2022
    %2537 = vmatprep.subr.bf16.mxu0 %v2031
    %2538 = vmatpush1.bf16.msra.mxu0 %v2030
    %2539 = vmatprep.subr.bf16.mxu0 %v2039
    %2540 = vmatpush1.bf16.msra.mxu0 %v2038
    %2541 = vmatprep.subr.bf16.mxu0 %v2047
    %2542 = vmatpush1.bf16.msra.mxu0 %v2046
    %2543 = vmatprep.mubr.bf16.mxu0 %v727
    %2544 = vmatmul.mubr.bf16.gmra.mrb[0].mxu0 %v726
    %v2545 = vpop.f32.mrb[0].mxu0
    %v2546 = vadd.f32 %v2505, %v2545
    %v2547 = vpop.f32.mrb[0].mxu0
    %v2548 = vadd.f32 %v2507, %v2547
    %v2549 = vpop.f32.mrb[0].mxu0
    %v2550 = vpop.f32.mrb[0].mxu0
    %2551 = vdwg.mxu0
    %2552 = vmatprep.subr.bf16.mxu0 %v1801
    %2553 = vmatpush1.bf16.msra.mxu0 %v1800
    %2554 = vmatprep.subr.bf16.mxu0 %v1809
    %2555 = vmatpush1.bf16.msra.mxu0 %v1808
    %2556 = vmatprep.subr.bf16.mxu0 %v1817
    %2557 = vmatpush1.bf16.msra.mxu0 %v1816
    %2558 = vmatprep.subr.bf16.mxu0 %v1825
    %2559 = vmatpush1.bf16.msra.mxu0 %v1824
    %2560 = vmatprep.subr.bf16.mxu0 %v1833
    %2561 = vmatpush1.bf16.msra.mxu0 %v1832
    %2562 = vmatprep.subr.bf16.mxu0 %v1841
    %2563 = vmatpush1.bf16.msra.mxu0 %v1840
    %2564 = vmatprep.subr.bf16.mxu0 %v1849
    %2565 = vmatpush1.bf16.msra.mxu0 %v1848
    %2566 = vmatprep.subr.bf16.mxu0 %v1857
    %2567 = vmatpush1.bf16.msra.mxu0 %v1856
    %2568 = vmatprep.subr.bf16.mxu0 %v1865
    %2569 = vmatpush1.bf16.msra.mxu0 %v1864
    %2570 = vmatprep.subr.bf16.mxu0 %v1873
    %2571 = vmatpush1.bf16.msra.mxu0 %v1872
    %2572 = vmatprep.subr.bf16.mxu0 %v1881
    %2573 = vmatpush1.bf16.msra.mxu0 %v1880
    %2574 = vmatprep.subr.bf16.mxu0 %v1889
    %2575 = vmatpush1.bf16.msra.mxu0 %v1888
    %2576 = vmatprep.subr.bf16.mxu0 %v1897
    %2577 = vmatpush1.bf16.msra.mxu0 %v1896
    %2578 = vmatprep.subr.bf16.mxu0 %v1905
    %2579 = vmatpush1.bf16.msra.mxu0 %v1904
    %2580 = vmatprep.subr.bf16.mxu0 %v1913
    %2581 = vmatpush1.bf16.msra.mxu0 %v1912
    %2582 = vmatprep.subr.bf16.mxu0 %v1921
    %2583 = vmatpush1.bf16.msra.mxu0 %v1920
    %2584 = vmatprep.mubr.bf16.mxu0 %v725
    %2585 = vmatmul.mubr.bf16.gmra.mrb[0].mxu0 %v724
    %v2586 = vpop.f32.mrb[0].mxu0
    %v2587 = vadd.f32 %v1013, %v2586
    %v2588 = vpop.f32.mrb[0].mxu0
    %v2589 = vadd.f32 %v1017, %v2588
    %v2590 = vpop.f32.mrb[0].mxu0
    %v2591 = vpop.f32.mrb[0].mxu0
    %2592 = vdwg.mxu0
    %2593 = vmatprep.subr.bf16.mxu0 %v1929
    %2594 = vmatpush1.bf16.msra.mxu0 %v1928
    %2595 = vmatprep.subr.bf16.mxu0 %v1937
    %2596 = vmatpush1.bf16.msra.mxu0 %v1936
    %2597 = vmatprep.subr.bf16.mxu0 %v1945
    %2598 = vmatpush1.bf16.msra.mxu0 %v1944
    %2599 = vmatprep.subr.bf16.mxu0 %v1953
    %2600 = vmatpush1.bf16.msra.mxu0 %v1952
    %2601 = vmatprep.subr.bf16.mxu0 %v1961
    %2602 = vmatpush1.bf16.msra.mxu0 %v1960
    %2603 = vmatprep.subr.bf16.mxu0 %v1969
    %2604 = vmatpush1.bf16.msra.mxu0 %v1968
    %2605 = vmatprep.subr.bf16.mxu0 %v1977
    %2606 = vmatpush1.bf16.msra.mxu0 %v1976
    %2607 = vmatprep.subr.bf16.mxu0 %v1985
    %2608 = vmatpush1.bf16.msra.mxu0 %v1984
    %2609 = vmatprep.subr.bf16.mxu0 %v1993
    %2610 = vmatpush1.bf16.msra.mxu0 %v1992
    %2611 = vmatprep.subr.bf16.mxu0 %v2001
    %2612 = vmatpush1.bf16.msra.mxu0 %v2000
    %2613 = vmatprep.subr.bf16.mxu0 %v2009
    %2614 = vmatpush1.bf16.msra.mxu0 %v2008
    %2615 = vmatprep.subr.bf16.mxu0 %v2017
    %2616 = vmatpush1.bf16.msra.mxu0 %v2016
    %2617 = vmatprep.subr.bf16.mxu0 %v2025
    %2618 = vmatpush1.bf16.msra.mxu0 %v2024
    %2619 = vmatprep.subr.bf16.mxu0 %v2033
    %2620 = vmatpush1.bf16.msra.mxu0 %v2032
    %2621 = vmatprep.subr.bf16.mxu0 %v2041
    %2622 = vmatpush1.bf16.msra.mxu0 %v2040
    %2623 = vmatprep.subr.bf16.mxu0 %v2049
    %2624 = vmatpush1.bf16.msra.mxu0 %v2048
    %2625 = vmatprep.mubr.bf16.mxu0 %v727
    %2626 = vmatmul.mubr.bf16.gmra.mrb[0].mxu0 %v726
    %v2627 = vpop.f32.mrb[0].mxu0
    %v2628 = vadd.f32 %v2587, %v2627
    %v2629 = vpop.f32.mrb[0].mxu0
    %v2630 = vadd.f32 %v2589, %v2629
    %v2631 = vpop.f32.mrb[0].mxu0
    %v2632 = vpop.f32.mrb[0].mxu0
    %2633 = vdwg.mxu0
    %v2634 = vmax.f32 %v2382, 0.0
    %v2635 = vmax.f32 %v2384, 0.0
    %v2636 = vmax.f32 %v2464, 0.0
    %v2637 = vmax.f32 %v2466, 0.0
    %v2638 = vmax.f32 %v2546, 0.0
    %v2639 = vmax.f32 %v2548, 0.0
    %v2640 = vmax.f32 %v2628, 0.0
    %v2641 = vmax.f32 %v2630, 0.0
    %v2642 = vpack.c.bf16 %v2634, %v2634
    %v2643 = vpack.c.bf16 %v2635, %v2635
    %v2644 = vpack.c.bf16 %v2636, %v2636
    %v2645 = vpack.c.bf16 %v2637, %v2637
    %v2646 = vpack.c.bf16 %v2638, %v2638
    %v2647 = vpack.c.bf16 %v2639, %v2639
    %v2648 = vpack.c.bf16 %v2640, %v2640
    %v2649 = vpack.c.bf16 %v2641, %v2641
    %v2650 = vld [vmem:[#allocation14] sm:$0xf]
    %v2651 = vld [vmem:[#allocation14 + $0x4] sm:$0xf]
    %v2652 = vld [vmem:[#allocation14 + $0x8] sm:$0xf]
    %v2653 = vld [vmem:[#allocation14 + $0xc] sm:$0xf]
    %v2654 = vld [vmem:[#allocation14 + $0x10] sm:$0xf]
    %v2655 = vld [vmem:[#allocation14 + $0x14] sm:$0xf]
    %v2656 = vld [vmem:[#allocation14 + $0x18] sm:$0xf]
    %v2657 = vld [vmem:[#allocation14 + $0x1c] sm:$0xf]
    %v2658 = vld [vmem:[#allocation14 + $0x20] sm:$0xf]
    %v2659 = vld [vmem:[#allocation14 + $0x24] sm:$0xf]
    %v2660 = vld [vmem:[#allocation14 + $0x28] sm:$0xf]
    %v2661 = vld [vmem:[#allocation14 + $0x2c] sm:$0xf]
    %v2662 = vld [vmem:[#allocation14 + $0x30] sm:$0xf]
    %v2663 = vld [vmem:[#allocation14 + $0x34] sm:$0xf]
    %v2664 = vld [vmem:[#allocation14 + $0x38] sm:$0xf]
    %v2665 = vld [vmem:[#allocation14 + $0x3c] sm:$0xf]
    %v2666 = vld [vmem:[#allocation14 + $0x40] sm:$0xf]
    %v2667 = vld [vmem:[#allocation14 + $0x44] sm:$0xf]
    %v2668 = vld [vmem:[#allocation14 + $0x48] sm:$0xf]
    %v2669 = vld [vmem:[#allocation14 + $0x4c] sm:$0xf]
    %v2670 = vld [vmem:[#allocation14 + $0x50] sm:$0xf]
    %v2671 = vld [vmem:[#allocation14 + $0x54] sm:$0xf]
    %v2672 = vld [vmem:[#allocation14 + $0x58] sm:$0xf]
    %v2673 = vld [vmem:[#allocation14 + $0x5c] sm:$0xf]
    %v2674 = vld [vmem:[#allocation14 + $0x60] sm:$0xf]
    %v2675 = vld [vmem:[#allocation14 + $0x64] sm:$0xf]
    %v2676 = vld [vmem:[#allocation14 + $0x68] sm:$0xf]
    %v2677 = vld [vmem:[#allocation14 + $0x6c] sm:$0xf]
    %v2678 = vld [vmem:[#allocation14 + $0x70] sm:$0xf]
    %v2679 = vld [vmem:[#allocation14 + $0x74] sm:$0xf]
    %v2680 = vld [vmem:[#allocation14 + $0x78] sm:$0xf]
    %v2681 = vld [vmem:[#allocation14 + $0x7c] sm:$0xf]
    %v2682 = vld [vmem:[#allocation14 + $0x80] sm:$0xf]
    %v2683 = vld [vmem:[#allocation14 + $0x84] sm:$0xf]
    %v2684 = vld [vmem:[#allocation14 + $0x88] sm:$0xf]
    %v2685 = vld [vmem:[#allocation14 + $0x8c] sm:$0xf]
    %v2686 = vld [vmem:[#allocation14 + $0x90] sm:$0xf]
    %v2687 = vld [vmem:[#allocation14 + $0x94] sm:$0xf]
    %v2688 = vld [vmem:[#allocation14 + $0x98] sm:$0xf]
    %v2689 = vld [vmem:[#allocation14 + $0x9c] sm:$0xf]
    %v2690 = vld [vmem:[#allocation14 + $0xa0] sm:$0xf]
    %v2691 = vld [vmem:[#allocation14 + $0xa4] sm:$0xf]
    %v2692 = vld [vmem:[#allocation14 + $0xa8] sm:$0xf]
    %v2693 = vld [vmem:[#allocation14 + $0xac] sm:$0xf]
    %v2694 = vld [vmem:[#allocation14 + $0xb0] sm:$0xf]
    %v2695 = vld [vmem:[#allocation14 + $0xb4] sm:$0xf]
    %v2696 = vld [vmem:[#allocation14 + $0xb8] sm:$0xf]
    %v2697 = vld [vmem:[#allocation14 + $0xbc] sm:$0xf]
    %v2698 = vld [vmem:[#allocation14 + $0xc0] sm:$0xf]
    %v2699 = vld [vmem:[#allocation14 + $0xc4] sm:$0xf]
    %v2700 = vld [vmem:[#allocation14 + $0xc8] sm:$0xf]
    %v2701 = vld [vmem:[#allocation14 + $0xcc] sm:$0xf]
    %v2702 = vld [vmem:[#allocation14 + $0xd0] sm:$0xf]
    %v2703 = vld [vmem:[#allocation14 + $0xd4] sm:$0xf]
    %v2704 = vld [vmem:[#allocation14 + $0xd8] sm:$0xf]
    %v2705 = vld [vmem:[#allocation14 + $0xdc] sm:$0xf]
    %v2706 = vld [vmem:[#allocation14 + $0xe0] sm:$0xf]
    %v2707 = vld [vmem:[#allocation14 + $0xe4] sm:$0xf]
    %v2708 = vld [vmem:[#allocation14 + $0xe8] sm:$0xf]
    %v2709 = vld [vmem:[#allocation14 + $0xec] sm:$0xf]
    %v2710 = vld [vmem:[#allocation14 + $0xf0] sm:$0xf]
    %v2711 = vld [vmem:[#allocation14 + $0xf4] sm:$0xf]
    %v2712 = vld [vmem:[#allocation14 + $0xf8] sm:$0xf]
    %v2713 = vld [vmem:[#allocation14 + $0xfc] sm:$0xf]
    %v2714 = vld [vmem:[#allocation14 + $0x100] sm:$0xf]
    %v2715 = vld [vmem:[#allocation14 + $0x104] sm:$0xf]
    %v2716 = vld [vmem:[#allocation14 + $0x108] sm:$0xf]
    %v2717 = vld [vmem:[#allocation14 + $0x10c] sm:$0xf]
    %v2718 = vld [vmem:[#allocation14 + $0x110] sm:$0xf]
    %v2719 = vld [vmem:[#allocation14 + $0x114] sm:$0xf]
    %v2720 = vld [vmem:[#allocation14 + $0x118] sm:$0xf]
    %v2721 = vld [vmem:[#allocation14 + $0x11c] sm:$0xf]
    %v2722 = vld [vmem:[#allocation14 + $0x120] sm:$0xf]
    %v2723 = vld [vmem:[#allocation14 + $0x124] sm:$0xf]
    %v2724 = vld [vmem:[#allocation14 + $0x128] sm:$0xf]
    %v2725 = vld [vmem:[#allocation14 + $0x12c] sm:$0xf]
    %v2726 = vld [vmem:[#allocation14 + $0x130] sm:$0xf]
    %v2727 = vld [vmem:[#allocation14 + $0x134] sm:$0xf]
    %v2728 = vld [vmem:[#allocation14 + $0x138] sm:$0xf]
    %v2729 = vld [vmem:[#allocation14 + $0x13c] sm:$0xf]
    %v2730 = vld [vmem:[#allocation14 + $0x140] sm:$0xf]
    %v2731 = vld [vmem:[#allocation14 + $0x144] sm:$0xf]
    %v2732 = vld [vmem:[#allocation14 + $0x148] sm:$0xf]
    %v2733 = vld [vmem:[#allocation14 + $0x14c] sm:$0xf]
    %v2734 = vld [vmem:[#allocation14 + $0x150] sm:$0xf]
    %v2735 = vld [vmem:[#allocation14 + $0x154] sm:$0xf]
    %v2736 = vld [vmem:[#allocation14 + $0x158] sm:$0xf]
    %v2737 = vld [vmem:[#allocation14 + $0x15c] sm:$0xf]
    %v2738 = vld [vmem:[#allocation14 + $0x160] sm:$0xf]
    %v2739 = vld [vmem:[#allocation14 + $0x164] sm:$0xf]
    %v2740 = vld [vmem:[#allocation14 + $0x168] sm:$0xf]
    %v2741 = vld [vmem:[#allocation14 + $0x16c] sm:$0xf]
    %v2742 = vld [vmem:[#allocation14 + $0x170] sm:$0xf]
    %v2743 = vld [vmem:[#allocation14 + $0x174] sm:$0xf]
    %v2744 = vld [vmem:[#allocation14 + $0x178] sm:$0xf]
    %v2745 = vld [vmem:[#allocation14 + $0x17c] sm:$0xf]
    %v2746 = vld [vmem:[#allocation14 + $0x180] sm:$0xf]
    %v2747 = vld [vmem:[#allocation14 + $0x184] sm:$0xf]
    %v2748 = vld [vmem:[#allocation14 + $0x188] sm:$0xf]
    %v2749 = vld [vmem:[#allocation14 + $0x18c] sm:$0xf]
    %v2750 = vld [vmem:[#allocation14 + $0x190] sm:$0xf]
    %v2751 = vld [vmem:[#allocation14 + $0x194] sm:$0xf]
    %v2752 = vld [vmem:[#allocation14 + $0x198] sm:$0xf]
    %v2753 = vld [vmem:[#allocation14 + $0x19c] sm:$0xf]
    %v2754 = vld [vmem:[#allocation14 + $0x1a0] sm:$0xf]
    %v2755 = vld [vmem:[#allocation14 + $0x1a4] sm:$0xf]
    %v2756 = vld [vmem:[#allocation14 + $0x1a8] sm:$0xf]
    %v2757 = vld [vmem:[#allocation14 + $0x1ac] sm:$0xf]
    %v2758 = vld [vmem:[#allocation14 + $0x1b0] sm:$0xf]
    %v2759 = vld [vmem:[#allocation14 + $0x1b4] sm:$0xf]
    %v2760 = vld [vmem:[#allocation14 + $0x1b8] sm:$0xf]
    %v2761 = vld [vmem:[#allocation14 + $0x1bc] sm:$0xf]
    %v2762 = vld [vmem:[#allocation14 + $0x1c0] sm:$0xf]
    %v2763 = vld [vmem:[#allocation14 + $0x1c4] sm:$0xf]
    %v2764 = vld [vmem:[#allocation14 + $0x1c8] sm:$0xf]
    %v2765 = vld [vmem:[#allocation14 + $0x1cc] sm:$0xf]
    %v2766 = vld [vmem:[#allocation14 + $0x1d0] sm:$0xf]
    %v2767 = vld [vmem:[#allocation14 + $0x1d4] sm:$0xf]
    %v2768 = vld [vmem:[#allocation14 + $0x1d8] sm:$0xf]
    %v2769 = vld [vmem:[#allocation14 + $0x1dc] sm:$0xf]
    %v2770 = vld [vmem:[#allocation14 + $0x1e0] sm:$0xf]
    %v2771 = vld [vmem:[#allocation14 + $0x1e4] sm:$0xf]
    %v2772 = vld [vmem:[#allocation14 + $0x1e8] sm:$0xf]
    %v2773 = vld [vmem:[#allocation14 + $0x1ec] sm:$0xf]
    %v2774 = vld [vmem:[#allocation14 + $0x1f0] sm:$0xf]
    %v2775 = vld [vmem:[#allocation14 + $0x1f4] sm:$0xf]
    %v2776 = vld [vmem:[#allocation14 + $0x1f8] sm:$0xf]
    %v2777 = vld [vmem:[#allocation14 + $0x1fc] sm:$0xf]
    %v2778 = vld [vmem:[#allocation16] sm:$0x1]
    %v2780 = vlaneseq
    %v2781 = vshrl.u32 %v2780, 7
    %v2782 = vsub.s32 0, %v2781
    %v2783 = vrot.slane %v2778, %v2782
    %v2913 = vunpack.c.l.b16 %v2650
    %v2914 = vunpack.c.l.b16 %v2651
    %v2915 = vunpack.c.l.b16 %v2652
    %v2916 = vunpack.c.l.b16 %v2653
    %v2917 = vunpack.c.l.b16 %v2654
    %v2918 = vunpack.c.l.b16 %v2655
    %v2919 = vunpack.c.l.b16 %v2656
    %v2920 = vunpack.c.l.b16 %v2657
    %v2921 = vunpack.c.l.b16 %v2658
    %v2922 = vunpack.c.l.b16 %v2659
    %v2923 = vunpack.c.l.b16 %v2660
    %v2924 = vunpack.c.l.b16 %v2661
    %v2925 = vunpack.c.l.b16 %v2662
    %v2926 = vunpack.c.l.b16 %v2663
    %v2927 = vunpack.c.l.b16 %v2664
    %v2928 = vunpack.c.l.b16 %v2665
    %v2929 = vunpack.c.l.b16 %v2666
    %v2930 = vunpack.c.l.b16 %v2667
    %v2931 = vunpack.c.l.b16 %v2668
    %v2932 = vunpack.c.l.b16 %v2669
    %v2933 = vunpack.c.l.b16 %v2670
    %v2934 = vunpack.c.l.b16 %v2671
    %v2935 = vunpack.c.l.b16 %v2672
    %v2936 = vunpack.c.l.b16 %v2673
    %v2937 = vunpack.c.l.b16 %v2674
    %v2938 = vunpack.c.l.b16 %v2675
    %v2939 = vunpack.c.l.b16 %v2676
    %v2940 = vunpack.c.l.b16 %v2677
    %v2941 = vunpack.c.l.b16 %v2678
    %v2942 = vunpack.c.l.b16 %v2679
    %v2943 = vunpack.c.l.b16 %v2680
    %v2944 = vunpack.c.l.b16 %v2681
    %v2945 = vunpack.c.l.b16 %v2682
    %v2946 = vunpack.c.l.b16 %v2683
    %v2947 = vunpack.c.l.b16 %v2684
    %v2948 = vunpack.c.l.b16 %v2685
    %v2949 = vunpack.c.l.b16 %v2686
    %v2950 = vunpack.c.l.b16 %v2687
    %v2951 = vunpack.c.l.b16 %v2688
    %v2952 = vunpack.c.l.b16 %v2689
    %v2953 = vunpack.c.l.b16 %v2690
    %v2954 = vunpack.c.l.b16 %v2691
    %v2955 = vunpack.c.l.b16 %v2692
    %v2956 = vunpack.c.l.b16 %v2693
    %v2957 = vunpack.c.l.b16 %v2694
    %v2958 = vunpack.c.l.b16 %v2695
    %v2959 = vunpack.c.l.b16 %v2696
    %v2960 = vunpack.c.l.b16 %v2697
    %v2961 = vunpack.c.l.b16 %v2698
    %v2962 = vunpack.c.l.b16 %v2699
    %v2963 = vunpack.c.l.b16 %v2700
    %v2964 = vunpack.c.l.b16 %v2701
    %v2965 = vunpack.c.l.b16 %v2702
    %v2966 = vunpack.c.l.b16 %v2703
    %v2967 = vunpack.c.l.b16 %v2704
    %v2968 = vunpack.c.l.b16 %v2705
    %v2969 = vunpack.c.l.b16 %v2706
    %v2970 = vunpack.c.l.b16 %v2707
    %v2971 = vunpack.c.l.b16 %v2708
    %v2972 = vunpack.c.l.b16 %v2709
    %v2973 = vunpack.c.l.b16 %v2710
    %v2974 = vunpack.c.l.b16 %v2711
    %v2975 = vunpack.c.l.b16 %v2712
    %v2976 = vunpack.c.l.b16 %v2713
    %v2977 = vunpack.c.l.b16 %v2714
    %v2978 = vunpack.c.l.b16 %v2715
    %v2979 = vunpack.c.l.b16 %v2716
    %v2980 = vunpack.c.l.b16 %v2717
    %v2981 = vunpack.c.l.b16 %v2718
    %v2982 = vunpack.c.l.b16 %v2719
    %v2983 = vunpack.c.l.b16 %v2720
    %v2984 = vunpack.c.l.b16 %v2721
    %v2985 = vunpack.c.l.b16 %v2722
    %v2986 = vunpack.c.l.b16 %v2723
    %v2987 = vunpack.c.l.b16 %v2724
    %v2988 = vunpack.c.l.b16 %v2725
    %v2989 = vunpack.c.l.b16 %v2726
    %v2990 = vunpack.c.l.b16 %v2727
    %v2991 = vunpack.c.l.b16 %v2728
    %v2992 = vunpack.c.l.b16 %v2729
    %v2993 = vunpack.c.l.b16 %v2730
    %v2994 = vunpack.c.l.b16 %v2731
    %v2995 = vunpack.c.l.b16 %v2732
    %v2996 = vunpack.c.l.b16 %v2733
    %v2997 = vunpack.c.l.b16 %v2734
    %v2998 = vunpack.c.l.b16 %v2735
    %v2999 = vunpack.c.l.b16 %v2736
    %v3000 = vunpack.c.l.b16 %v2737
    %v3001 = vunpack.c.l.b16 %v2738
    %v3002 = vunpack.c.l.b16 %v2739
    %v3003 = vunpack.c.l.b16 %v2740
    %v3004 = vunpack.c.l.b16 %v2741
    %v3005 = vunpack.c.l.b16 %v2742
    %v3006 = vunpack.c.l.b16 %v2743
    %v3007 = vunpack.c.l.b16 %v2744
    %v3008 = vunpack.c.l.b16 %v2745
    %v3009 = vunpack.c.l.b16 %v2746
    %v3010 = vunpack.c.l.b16 %v2747
    %v3011 = vunpack.c.l.b16 %v2748
    %v3012 = vunpack.c.l.b16 %v2749
    %v3013 = vunpack.c.l.b16 %v2750
    %v3014 = vunpack.c.l.b16 %v2751
    %v3015 = vunpack.c.l.b16 %v2752
    %v3016 = vunpack.c.l.b16 %v2753
    %v3017 = vunpack.c.l.b16 %v2754
    %v3018 = vunpack.c.l.b16 %v2755
    %v3019 = vunpack.c.l.b16 %v2756
    %v3020 = vunpack.c.l.b16 %v2757
    %v3021 = vunpack.c.l.b16 %v2758
    %v3022 = vunpack.c.l.b16 %v2759
    %v3023 = vunpack.c.l.b16 %v2760
    %v3024 = vunpack.c.l.b16 %v2761
    %v3025 = vunpack.c.l.b16 %v2762
    %v3026 = vunpack.c.l.b16 %v2763
    %v3027 = vunpack.c.l.b16 %v2764
    %v3028 = vunpack.c.l.b16 %v2765
    %v3029 = vunpack.c.l.b16 %v2766
    %v3030 = vunpack.c.l.b16 %v2767
    %v3031 = vunpack.c.l.b16 %v2768
    %v3032 = vunpack.c.l.b16 %v2769
    %v3033 = vunpack.c.l.b16 %v2770
    %v3034 = vunpack.c.l.b16 %v2771
    %v3035 = vunpack.c.l.b16 %v2772
    %v3036 = vunpack.c.l.b16 %v2773
    %v3037 = vunpack.c.l.b16 %v2774
    %v3038 = vunpack.c.l.b16 %v2775
    %v3039 = vunpack.c.l.b16 %v2776
    %v3040 = vunpack.c.l.b16 %v2777
    %v3041 = vpack.c.b16 %v2914, %v2913
    %v3042 = vpack.c.b16 %v2916, %v2915
    %v3043 = vpack.c.b16 %v2918, %v2917
    %v3044 = vpack.c.b16 %v2920, %v2919
    %v3045 = vpack.c.b16 %v2922, %v2921
    %v3046 = vpack.c.b16 %v2924, %v2923
    %v3047 = vpack.c.b16 %v2926, %v2925
    %v3048 = vpack.c.b16 %v2928, %v2927
    %v3049 = vpack.c.b16 %v2930, %v2929
    %v3050 = vpack.c.b16 %v2932, %v2931
    %v3051 = vpack.c.b16 %v2934, %v2933
    %v3052 = vpack.c.b16 %v2936, %v2935
    %v3053 = vpack.c.b16 %v2938, %v2937
    %v3054 = vpack.c.b16 %v2940, %v2939
    %v3055 = vpack.c.b16 %v2942, %v2941
    %v3056 = vpack.c.b16 %v2944, %v2943
    %v3057 = vpack.c.b16 %v2946, %v2945
    %v3058 = vpack.c.b16 %v2948, %v2947
    %v3059 = vpack.c.b16 %v2950, %v2949
    %v3060 = vpack.c.b16 %v2952, %v2951
    %v3061 = vpack.c.b16 %v2954, %v2953
    %v3062 = vpack.c.b16 %v2956, %v2955
    %v3063 = vpack.c.b16 %v2958, %v2957
    %v3064 = vpack.c.b16 %v2960, %v2959
    %v3065 = vpack.c.b16 %v2962, %v2961
    %v3066 = vpack.c.b16 %v2964, %v2963
    %v3067 = vpack.c.b16 %v2966, %v2965
    %v3068 = vpack.c.b16 %v2968, %v2967
    %v3069 = vpack.c.b16 %v2970, %v2969
    %v3070 = vpack.c.b16 %v2972, %v2971
    %v3071 = vpack.c.b16 %v2974, %v2973
    %v3072 = vpack.c.b16 %v2976, %v2975
    %v3073 = vpack.c.b16 %v2978, %v2977
    %v3074 = vpack.c.b16 %v2980, %v2979
    %v3075 = vpack.c.b16 %v2982, %v2981
    %v3076 = vpack.c.b16 %v2984, %v2983
    %v3077 = vpack.c.b16 %v2986, %v2985
    %v3078 = vpack.c.b16 %v2988, %v2987
    %v3079 = vpack.c.b16 %v2990, %v2989
    %v3080 = vpack.c.b16 %v2992, %v2991
    %v3081 = vpack.c.b16 %v2994, %v2993
    %v3082 = vpack.c.b16 %v2996, %v2995
    %v3083 = vpack.c.b16 %v2998, %v2997
    %v3084 = vpack.c.b16 %v3000, %v2999
    %v3085 = vpack.c.b16 %v3002, %v3001
    %v3086 = vpack.c.b16 %v3004, %v3003
    %v3087 = vpack.c.b16 %v3006, %v3005
    %v3088 = vpack.c.b16 %v3008, %v3007
    %v3089 = vpack.c.b16 %v3010, %v3009
    %v3090 = vpack.c.b16 %v3012, %v3011
    %v3091 = vpack.c.b16 %v3014, %v3013
    %v3092 = vpack.c.b16 %v3016, %v3015
    %v3093 = vpack.c.b16 %v3018, %v3017
    %v3094 = vpack.c.b16 %v3020, %v3019
    %v3095 = vpack.c.b16 %v3022, %v3021
    %v3096 = vpack.c.b16 %v3024, %v3023
    %v3097 = vpack.c.b16 %v3026, %v3025
    %v3098 = vpack.c.b16 %v3028, %v3027
    %v3099 = vpack.c.b16 %v3030, %v3029
    %v3100 = vpack.c.b16 %v3032, %v3031
    %v3101 = vpack.c.b16 %v3034, %v3033
    %v3102 = vpack.c.b16 %v3036, %v3035
    %v3103 = vpack.c.b16 %v3038, %v3037
    %v3104 = vpack.c.b16 %v3040, %v3039
    %3169 = vmatprep.subr.bf16.mxu0 0
    %3170 = vmatpush1.bf16.msra.mxu0 %v3041
    %3171 = vmatprep.subr.bf16.mxu0 0
    %3172 = vmatpush1.bf16.msra.mxu0 %v3042
    %3173 = vmatprep.subr.bf16.mxu0 0
    %3174 = vmatpush1.bf16.msra.mxu0 %v3043
    %3175 = vmatprep.subr.bf16.mxu0 0
    %3176 = vmatpush1.bf16.msra.mxu0 %v3044
    %3177 = vmatprep.subr.bf16.mxu0 0
    %3178 = vmatpush1.bf16.msra.mxu0 %v3045
    %3179 = vmatprep.subr.bf16.mxu0 0
    %3180 = vmatpush1.bf16.msra.mxu0 %v3046
    %3181 = vmatprep.subr.bf16.mxu0 0
    %3182 = vmatpush1.bf16.msra.mxu0 %v3047
    %3183 = vmatprep.subr.bf16.mxu0 0
    %3184 = vmatpush1.bf16.msra.mxu0 %v3048
    %3185 = vmatprep.subr.bf16.mxu0 0
    %3186 = vmatpush1.bf16.msra.mxu0 %v3049
    %3187 = vmatprep.subr.bf16.mxu0 0
    %3188 = vmatpush1.bf16.msra.mxu0 %v3050
    %3189 = vmatprep.subr.bf16.mxu0 0
    %3190 = vmatpush1.bf16.msra.mxu0 %v3051
    %3191 = vmatprep.subr.bf16.mxu0 0
    %3192 = vmatpush1.bf16.msra.mxu0 %v3052
    %3193 = vmatprep.subr.bf16.mxu0 0
    %3194 = vmatpush1.bf16.msra.mxu0 %v3053
    %3195 = vmatprep.subr.bf16.mxu0 0
    %3196 = vmatpush1.bf16.msra.mxu0 %v3054
    %3197 = vmatprep.subr.bf16.mxu0 0
    %3198 = vmatpush1.bf16.msra.mxu0 %v3055
    %3199 = vmatprep.subr.bf16.mxu0 0
    %3200 = vmatpush1.bf16.msra.mxu0 %v3056
    %3201 = vmatprep.mubr.bf16.mxu0 %v2643
    %3202 = vmatmul.mubr.bf16.gmra.mrb[0].mxu0 %v2642
    %v3203 = vpop.f32.mrb[0].mxu0
    %v3204 = vadd.f32 %v2783, %v3203
    %v3205 = vpop.f32.mrb[0].mxu0
    %v3206 = vpop.f32.mrb[0].mxu0
    %v3207 = vpop.f32.mrb[0].mxu0
    %3208 = vdwg.mxu0
    %3209 = vmatprep.subr.bf16.mxu0 0
    %3210 = vmatpush1.bf16.msra.mxu0 %v3057
    %3211 = vmatprep.subr.bf16.mxu0 0
    %3212 = vmatpush1.bf16.msra.mxu0 %v3058
    %3213 = vmatprep.subr.bf16.mxu0 0
    %3214 = vmatpush1.bf16.msra.mxu0 %v3059
    %3215 = vmatprep.subr.bf16.mxu0 0
    %3216 = vmatpush1.bf16.msra.mxu0 %v3060
    %3217 = vmatprep.subr.bf16.mxu0 0
    %3218 = vmatpush1.bf16.msra.mxu0 %v3061
    %3219 = vmatprep.subr.bf16.mxu0 0
    %3220 = vmatpush1.bf16.msra.mxu0 %v3062
    %3221 = vmatprep.subr.bf16.mxu0 0
    %3222 = vmatpush1.bf16.msra.mxu0 %v3063
    %3223 = vmatprep.subr.bf16.mxu0 0
    %3224 = vmatpush1.bf16.msra.mxu0 %v3064
    %3225 = vmatprep.subr.bf16.mxu0 0
    %3226 = vmatpush1.bf16.msra.mxu0 %v3065
    %3227 = vmatprep.subr.bf16.mxu0 0
    %3228 = vmatpush1.bf16.msra.mxu0 %v3066
    %3229 = vmatprep.subr.bf16.mxu0 0
    %3230 = vmatpush1.bf16.msra.mxu0 %v3067
    %3231 = vmatprep.subr.bf16.mxu0 0
    %3232 = vmatpush1.bf16.msra.mxu0 %v3068
    %3233 = vmatprep.subr.bf16.mxu0 0
    %3234 = vmatpush1.bf16.msra.mxu0 %v3069
    %3235 = vmatprep.subr.bf16.mxu0 0
    %3236 = vmatpush1.bf16.msra.mxu0 %v3070
    %3237 = vmatprep.subr.bf16.mxu0 0
    %3238 = vmatpush1.bf16.msra.mxu0 %v3071
    %3239 = vmatprep.subr.bf16.mxu0 0
    %3240 = vmatpush1.bf16.msra.mxu0 %v3072
    %3241 = vmatprep.mubr.bf16.mxu0 %v2645
    %3242 = vmatmul.mubr.bf16.gmra.mrb[0].mxu0 %v2644
    %v3243 = vpop.f32.mrb[0].mxu0
    %v3244 = vadd.f32 %v3204, %v3243
    %v3245 = vpop.f32.mrb[0].mxu0
    %v3246 = vpop.f32.mrb[0].mxu0
    %v3247 = vpop.f32.mrb[0].mxu0
    %3248 = vdwg.mxu0
    %3249 = vmatprep.subr.bf16.mxu0 0
    %3250 = vmatpush1.bf16.msra.mxu0 %v3073
    %3251 = vmatprep.subr.bf16.mxu0 0
    %3252 = vmatpush1.bf16.msra.mxu0 %v3074
    %3253 = vmatprep.subr.bf16.mxu0 0
    %3254 = vmatpush1.bf16.msra.mxu0 %v3075
    %3255 = vmatprep.subr.bf16.mxu0 0
    %3256 = vmatpush1.bf16.msra.mxu0 %v3076
    %3257 = vmatprep.subr.bf16.mxu0 0
    %3258 = vmatpush1.bf16.msra.mxu0 %v3077
    %3259 = vmatprep.subr.bf16.mxu0 0
    %3260 = vmatpush1.bf16.msra.mxu0 %v3078
    %3261 = vmatprep.subr.bf16.mxu0 0
    %3262 = vmatpush1.bf16.msra.mxu0 %v3079
    %3263 = vmatprep.subr.bf16.mxu0 0
    %3264 = vmatpush1.bf16.msra.mxu0 %v3080
    %3265 = vmatprep.subr.bf16.mxu0 0
    %3266 = vmatpush1.bf16.msra.mxu0 %v3081
    %3267 = vmatprep.subr.bf16.mxu0 0
    %3268 = vmatpush1.bf16.msra.mxu0 %v3082
    %3269 = vmatprep.subr.bf16.mxu0 0
    %3270 = vmatpush1.bf16.msra.mxu0 %v3083
    %3271 = vmatprep.subr.bf16.mxu0 0
    %3272 = vmatpush1.bf16.msra.mxu0 %v3084
    %3273 = vmatprep.subr.bf16.mxu0 0
    %3274 = vmatpush1.bf16.msra.mxu0 %v3085
    %3275 = vmatprep.subr.bf16.mxu0 0
    %3276 = vmatpush1.bf16.msra.mxu0 %v3086
    %3277 = vmatprep.subr.bf16.mxu0 0
    %3278 = vmatpush1.bf16.msra.mxu0 %v3087
    %3279 = vmatprep.subr.bf16.mxu0 0
    %3280 = vmatpush1.bf16.msra.mxu0 %v3088
    %3281 = vmatprep.mubr.bf16.mxu0 %v2647
    %3282 = vmatmul.mubr.bf16.gmra.mrb[0].mxu0 %v2646
    %v3283 = vpop.f32.mrb[0].mxu0
    %v3284 = vadd.f32 %v3244, %v3283
    %v3285 = vpop.f32.mrb[0].mxu0
    %v3286 = vpop.f32.mrb[0].mxu0
    %v3287 = vpop.f32.mrb[0].mxu0
    %3288 = vdwg.mxu0
    %3289 = vmatprep.subr.bf16.mxu0 0
    %3290 = vmatpush1.bf16.msra.mxu0 %v3089
    %3291 = vmatprep.subr.bf16.mxu0 0
    %3292 = vmatpush1.bf16.msra.mxu0 %v3090
    %3293 = vmatprep.subr.bf16.mxu0 0
    %3294 = vmatpush1.bf16.msra.mxu0 %v3091
    %3295 = vmatprep.subr.bf16.mxu0 0
    %3296 = vmatpush1.bf16.msra.mxu0 %v3092
    %3297 = vmatprep.subr.bf16.mxu0 0
    %3298 = vmatpush1.bf16.msra.mxu0 %v3093
    %3299 = vmatprep.subr.bf16.mxu0 0
    %3300 = vmatpush1.bf16.msra.mxu0 %v3094
    %3301 = vmatprep.subr.bf16.mxu0 0
    %3302 = vmatpush1.bf16.msra.mxu0 %v3095
    %3303 = vmatprep.subr.bf16.mxu0 0
    %3304 = vmatpush1.bf16.msra.mxu0 %v3096
    %3305 = vmatprep.subr.bf16.mxu0 0
    %3306 = vmatpush1.bf16.msra.mxu0 %v3097
    %3307 = vmatprep.subr.bf16.mxu0 0
    %3308 = vmatpush1.bf16.msra.mxu0 %v3098
    %3309 = vmatprep.subr.bf16.mxu0 0
    %3310 = vmatpush1.bf16.msra.mxu0 %v3099
    %3311 = vmatprep.subr.bf16.mxu0 0
    %3312 = vmatpush1.bf16.msra.mxu0 %v3100
    %3313 = vmatprep.subr.bf16.mxu0 0
    %3314 = vmatpush1.bf16.msra.mxu0 %v3101
    %3315 = vmatprep.subr.bf16.mxu0 0
    %3316 = vmatpush1.bf16.msra.mxu0 %v3102
    %3317 = vmatprep.subr.bf16.mxu0 0
    %3318 = vmatpush1.bf16.msra.mxu0 %v3103
    %3319 = vmatprep.subr.bf16.mxu0 0
    %3320 = vmatpush1.bf16.msra.mxu0 %v3104
    %3321 = vmatprep.mubr.bf16.mxu0 %v2649
    %3322 = vmatmul.mubr.bf16.gmra.mrb[0].mxu0 %v2648
    %v3323 = vpop.f32.mrb[0].mxu0
    %v3324 = vadd.f32 %v3284, %v3323
    %v3325 = vpop.f32.mrb[0].mxu0
    %v3326 = vpop.f32.mrb[0].mxu0
    %v3327 = vpop.f32.mrb[0].mxu0
    %3328 = vdwg.mxu0
    %v3329 = vtanh.pop %v3324
    %3330 = vst [vmem:[#allocation17] sm:$0xff] %v3329
    // Predicated region
    $region74: #{generator_forward.1} parent=1 // pred_check
      _
    $region75: #{generator_forward.1} parent=1 // pred_check_branch
      %3332 = sbr.rel (0) target = $region77
    $region76: #{generator_forward.1} parent=1 // pred_region
      %s3334 = ssub.s32 128, 128
      %3335 = vsyncadd [#allocation4], %s3334
      %s3337 = sshll.u32 [#allocation17], 4
      %s3338 = int_to_ptr.vmem [resolvable:$true] %s3337
      %3340 = dma.vmem_to_hbm [thread:$0]  %s3338, 128, %s9, [#allocation4]
    $region77: #{generator_forward.1} parent=1 // pred_fallthru
      _
    // Predicated region
    $region78: #{generator_forward.1} parent=1 // pred_check
      _
    $region79: #{generator_forward.1} parent=1 // pred_check_branch
      %3342 = sbr.rel (0) target = $region81
    $region80: #{generator_forward.1} parent=1 // pred_region
      %3343 = dma.done [#allocation4], 128
    $region81: #{generator_forward.1} parent=1 // pred_fallthru
      _
    %3344 = vsyncpa [#allocation3], 1
    %3345 = vsyncpa [#allocation6], 1
    %3346 = vsyncpa [#allocation9], 1
    %3347 = vsyncpa [#allocation12], 1
    %3348 = vsyncpa [#allocation15], 1
    %3349 = vsyncpa [#allocation4], 1

</llo_original>
